<compile_context>
chip_gen: v6e
topology: v6e:2x2x1
jax: 0.10.0
libtpu: 0.0.40
codegen_flags: <defaults>
</compile_context>

<pallas_src>
import functools

import jax
import jax.numpy as jnp
from jax import lax
from jax.experimental import pallas as pl
from jax.experimental.pallas import tpu as pltpu


# ----------------------------- Pallas kernel ------------------------------ #
def _vp_kernel(x_ref,
               w1_ref, b1_ref, g1_ref, be1_ref,
               w2_ref, b2_ref, gwl_ref,
               scal_ref,
               o_ref,
               *, t_valid):
    """One batch-block (block_b elements, Tp padded timesteps) per grid step."""
    Bb, Tp, _ = x_ref.shape
    F = b1_ref.shape[-1]
    R = Bb * Tp

    def im2col(h3):
        # h3: (Bb, Tp, C) bf16 -> (Bb*Tp, 3C); zero halo row per batch element.
        C = h3.shape[-1]
        z = jnp.zeros((Bb, 1, C), h3.dtype)
        prev = jnp.concatenate([z, h3[:, :-1, :]], axis=1)   # prev[t] = h[t-1]
        nxt = jnp.concatenate([h3[:, 1:, :], z], axis=1)     # nxt[t]  = h[t+1]
        return jnp.concatenate([prev, h3, nxt], axis=-1).reshape(R, 3 * C)

    def ln_stats(h, eps=1e-5):
        # One-pass statistics: the two lane reductions are independent.
        mu = jnp.mean(h, axis=-1, keepdims=True)
        ms = jnp.mean(h * h, axis=-1, keepdims=True)
        return mu, lax.rsqrt(ms - mu * mu + eps)

    # --- block 1: conv1 (single 3H-deep MXU dot) -> ReLU -> LayerNorm ------ #
    h = jnp.dot(im2col(x_ref[...]), w1_ref[...],
                preferred_element_type=jnp.float32)
    h = jnp.maximum(h + b1_ref[...], 0.0)
    mu, inv = ln_stats(h)
    h = (h - mu) * inv * g1_ref[...] + be1_ref[...]

    # Zero rows past the true sequence length so conv2's +1 tap at row
    # t_valid-1 sees zero padding (matches the unpadded "same" conv).
    if t_valid < Tp:
        valid = (lax.broadcasted_iota(jnp.int32, (Bb, Tp, 1), 1)
                 < t_valid).reshape(R, 1)
        h = jnp.where(valid, h, 0.0)

    # --- block 2: conv2 -> ReLU -> fused (LayerNorm2 + Linear F->1) -------- #
    hb = h.astype(jnp.bfloat16)                 # single cast; shifts reuse it
    h2 = jnp.dot(im2col(hb.reshape(Bb, Tp, F)), w2_ref[...],
                 preferred_element_type=jnp.float32)
    h2 = jnp.maximum(h2 + b2_ref[...], 0.0)
    mu2, inv2 = ln_stats(h2)

    # sum(LN2(h2) * wl) + bl  ==  inv * (sum(h2*g2*wl) - mu*sum(g2*wl)) + c
    s_g = scal_ref[0]
    c = scal_ref[1]
    ysum = jnp.sum(h2 * gwl_ref[...], axis=-1, keepdims=True)       # (R, 1)
    y = inv2 * (ysum - mu2 * s_g) + c                               # (R, 1)
    o_ref[...] = y.reshape(Bb, 1, Tp)           # lane-dense full-width store


# ------------------------------ Host wrapper ------------------------------ #
def _pick_block_b(B):
    """Stack batch rows per grid step, but keep >=2 grid steps when B allows
    so both v7x TensorCores get work from the 'parallel' grid axis."""
    if B < 4:
        return 1
    bb = B // 2
    while B % bb:
        bb -= 1
    return bb


@functools.partial(jax.jit, static_argnames=("block_b",))
def variance_predictor(x, mask, params, *, block_b=None):
    """x: (B, T, H) f32, mask: (B, T) bool -> (B, T) f32."""
    B, T, H = x.shape
    K, _, F_ = params["w1"].shape
    if block_b is None:
        block_b = _pick_block_b(B)
    assert B % block_b == 0

    # Pad T to a multiple of 128: >=128 rows per MXU push and an unmasked
    # full-width output store. Padded rows are sliced off at the end.
    Tp = max(128, ((T + 127) // 128) * 128)

    # bf16 activations/weights for the MXU; everything after the matmuls is
    # f32. im2col weight layout: rows stacked [W[0]; W[1]; W[2]] to match
    # concat([prev, cur, nxt], -1).
    xb = jnp.pad(x.astype(jnp.bfloat16), ((0, 0), (0, Tp - T), (0, 0)))
    w1c = params["w1"].reshape(K * H, F_).astype(jnp.bfloat16)
    w2c = params["w2"].reshape(K * F_, F_).astype(jnp.bfloat16)

    # Fused LayerNorm2 + Linear constants.
    gwl = (params["g2"] * params["wl"]).astype(jnp.float32)          # (1, F)
    s_g = jnp.sum(gwl)
    c = jnp.sum(params["be2"] * params["wl"]) + params["bl"][0, 0]
    scal = jnp.stack([s_g, c]).astype(jnp.float32)                   # (2,) SMEM

    out = pl.pallas_call(
        functools.partial(_vp_kernel, t_valid=T),
        out_shape=jax.ShapeDtypeStruct((B, 1, Tp), jnp.float32),
        grid=(B // block_b,),
        in_specs=[
            pl.BlockSpec((block_b, Tp, H), lambda b: (b, 0, 0)),     # x (bf16)
            pl.BlockSpec((K * H, F_), lambda b: (0, 0)),             # w1 im2col
            pl.BlockSpec((1, F_), lambda b: (0, 0)),                 # b1
            pl.BlockSpec((1, F_), lambda b: (0, 0)),                 # ln1 gamma
            pl.BlockSpec((1, F_), lambda b: (0, 0)),                 # ln1 beta
            pl.BlockSpec((K * F_, F_), lambda b: (0, 0)),            # w2 im2col
            pl.BlockSpec((1, F_), lambda b: (0, 0)),                 # b2
            pl.BlockSpec((1, F_), lambda b: (0, 0)),                 # g2 * wl
            pl.BlockSpec(memory_space=pltpu.MemorySpace.SMEM),       # [s_g, c]
        ],
        out_specs=pl.BlockSpec((block_b, 1, Tp), lambda b: (b, 0, 0)),
        compiler_params=pltpu.CompilerParams(
            dimension_semantics=("parallel",)),
    )(xb,
      w1c, params["b1"], params["g1"], params["be1"],
      w2c, params["b2"], gwl,
      scal)

    y = out.reshape(B, Tp)[:, :T]               # drop size-1 dim + T padding
    return jnp.where(mask, 0.0, y)              # masked_fill on (B, T)


# --------------------------- Pure-JAX reference ---------------------------- #
def _reference(x, mask, p):
    """Reference forward. Conv matmul inputs are cast to bf16 (f32 accumulation)
    to mirror the kernel's MXU input precision; all other math is f32."""
    def conv(h, w, b):                          # h (B,T,C), w (K,Cin,Cout)
        k = w.shape[0]
        pad = (k - 1) // 2
        hp = jnp.pad(h, ((0, 0), (pad, pad), (0, 0)))
        T = h.shape[1]
        wb = w.astype(jnp.bfloat16)
        y = sum(jnp.einsum("btc,cf->btf",
                           hp[:, i:i + T].astype(jnp.bfloat16), wb[i],
                           preferred_element_type=jnp.float32)
                for i in range(k))
        return y + b[0]

    def ln(h, g, b, eps=1e-5):
        mu = h.mean(-1, keepdims=True)
        var = ((h - mu) ** 2).mean(-1, keepdims=True)
        return (h - mu) / jnp.sqrt(var + eps) * g[0] + b[0]

    h = ln(jnp.maximum(conv(x, p["w1"], p["b1"]), 0.0), p["g1"], p["be1"])
    h = ln(jnp.maximum(conv(h, p["w2"], p["b2"]), 0.0), p["g2"], p["be2"])
    y = jnp.einsum("btf,f->bt", h, p["wl"][0]) + p["bl"][0, 0]
    return jnp.where(mask, 0.0, y)


# ---------------------------------- Main ----------------------------------- #
if __name__ == "__main__":
    # model_config (synthetic, small):
    #   encoder_hidden = 32, filter_size = 32, kernel_size = 3, dropout (eval)
    B, T, H, F_, K = 2, 8, 32, 32, 3

    key = jax.random.PRNGKey(0)
    ks = jax.random.split(key, 8)

    def xavier(k, shape, fan_in, fan_out):
        limit = (6.0 / (fan_in + fan_out)) ** 0.5
        return jax.random.uniform(k, shape, jnp.float32, -limit, limit)

    params = {
        # conv1d_1: PyTorch weight (F, H, K) stored here as (K, H, F)
        "w1": xavier(ks[0], (K, H, F_), H * K, F_ * K),
        "b1": jnp.zeros((1, F_), jnp.float32),
        "g1": jnp.ones((1, F_), jnp.float32),
        "be1": jnp.zeros((1, F_), jnp.float32),
        # conv1d_2
        "w2": xavier(ks[1], (K, F_, F_), F_ * K, F_ * K),
        "b2": 0.01 * jax.random.normal(ks[2], (1, F_), jnp.float32),
        "g2": jnp.ones((1, F_), jnp.float32),
        "be2": jnp.zeros((1, F_), jnp.float32),
        # linear F -> 1, stored as a (1, F) row
        "wl": xavier(ks[3], (1, F_), F_, 1),
        "bl": jnp.zeros((1, 1), jnp.float32),
    }

    x = jax.random.normal(ks[4], (B, T, H), jnp.float32)
    # mask: last two timesteps of batch element 1 are padding
    mask = jnp.zeros((B, T), jnp.bool_).at[1, -2:].set(True)

    out = variance_predictor(x, mask, params)
    out = jax.block_until_ready(out)

    ref = _reference(x, mask, params)
    assert out.shape == (B, T)
    # Tolerance covers bf16-input matmuls (f32 accumulation) in both paths plus
    # one-pass vs two-pass LayerNorm statistics and the fused LN2+Linear.
    assert jnp.allclose(out, ref, rtol=5e-3, atol=5e-3), "mismatch vs reference"

    print("KERNEL_OK")
</pallas_src>

<mosaic_0001>
module attributes {stable_mosaic.version = 11 : i64} {
  func.func @_vp_kernel(%arg0: i32, %arg1: memref<1x128x32xbf16, #tpu.memory_space<vmem>>, %arg2: memref<96x32xbf16, #tpu.memory_space<vmem>>, %arg3: memref<1x32xf32, #tpu.memory_space<vmem>>, %arg4: memref<1x32xf32, #tpu.memory_space<vmem>>, %arg5: memref<1x32xf32, #tpu.memory_space<vmem>>, %arg6: memref<96x32xbf16, #tpu.memory_space<vmem>>, %arg7: memref<1x32xf32, #tpu.memory_space<vmem>>, %arg8: memref<1x32xf32, #tpu.memory_space<vmem>>, %arg9: memref<2xf32, #tpu.memory_space<smem>>, %arg10: memref<1x1x128xf32, #tpu.memory_space<vmem>>) attributes {dimension_semantics = [#tpu.dimension_semantics<parallel>], iteration_bounds = array<i64: 2>, scalar_prefetch = 0 : i64, scratch_operands = 0 : i64, tpu.core_type = #tpu.core_type<tc>, window_params = [{transform_indices = @transform_0, window_bounds = array<i64: 1, 128, 32>}, {pipeline_mode = #tpu.pipeline_mode<synchronous>, transform_indices = @transform_1, window_bounds = array<i64: 96, 32>}, {pipeline_mode = #tpu.pipeline_mode<synchronous>, transform_indices = @transform_2, window_bounds = array<i64: 1, 32>}, {pipeline_mode = #tpu.pipeline_mode<synchronous>, transform_indices = @transform_3, window_bounds = array<i64: 1, 32>}, {pipeline_mode = #tpu.pipeline_mode<synchronous>, transform_indices = @transform_4, window_bounds = array<i64: 1, 32>}, {pipeline_mode = #tpu.pipeline_mode<synchronous>, transform_indices = @transform_5, window_bounds = array<i64: 96, 32>}, {pipeline_mode = #tpu.pipeline_mode<synchronous>, transform_indices = @transform_6, window_bounds = array<i64: 1, 32>}, {pipeline_mode = #tpu.pipeline_mode<synchronous>, transform_indices = @transform_7, window_bounds = array<i64: 1, 32>}, {transform_indices = @transform_8, window_bounds = array<i64: 2>}, {transform_indices = @transform_9, window_bounds = array<i64: 1, 1, 128>}]} {
    %c0 = arith.constant 0 : index
    %c0_0 = arith.constant 0 : index
    %c0_1 = arith.constant 0 : index
    %0 = vector.load %arg1[%c0, %c0_0, %c0_1] : memref<1x128x32xbf16, #tpu.memory_space<vmem>>, vector<1x128x32xbf16>
    %cst = arith.constant 0.000000e+00 : bf16
    %1 = vector.broadcast %cst : bf16 to vector<1x1x32xbf16>
    %2 = vector.extract_strided_slice %0 {offsets = [0, 0, 0], sizes = [1, 127, 32], strides = [1, 1, 1]} : vector<1x128x32xbf16> to vector<1x127x32xbf16>
    %3 = tpu.concatenate %1, %2 in 1 : vector<1x1x32xbf16>, vector<1x127x32xbf16> -> vector<1x128x32xbf16>
    %4 = vector.extract_strided_slice %0 {offsets = [0, 1, 0], sizes = [1, 127, 32], strides = [1, 1, 1]} : vector<1x128x32xbf16> to vector<1x127x32xbf16>
    %5 = tpu.concatenate %4, %1 in 1 : vector<1x127x32xbf16>, vector<1x1x32xbf16> -> vector<1x128x32xbf16>
    %6 = tpu.concatenate %3, %0, %5 in 2 : vector<1x128x32xbf16>, vector<1x128x32xbf16>, vector<1x128x32xbf16> -> vector<1x128x96xbf16>
    %7 = vector.shape_cast %6 : vector<1x128x96xbf16> to vector<128x96xbf16>
    %c0_2 = arith.constant 0 : index
    %c0_3 = arith.constant 0 : index
    %8 = vector.load %arg2[%c0_2, %c0_3] : memref<96x32xbf16, #tpu.memory_space<vmem>>, vector<96x32xbf16>
    %cst_4 = arith.constant dense<0.000000e+00> : vector<128x32xf32>
    %9 = tpu.matmul %7, %8, %cst_4 {dimension_numbers = #tpu.dot_dimension_numbers<[1], [0], [0], [1], [0, 0, 1, 1], [], []>} : vector<128x96xbf16>, vector<96x32xbf16>, vector<128x32xf32> -> vector<128x32xf32>
    %c0_5 = arith.constant 0 : index
    %c0_6 = arith.constant 0 : index
    %10 = vector.load %arg3[%c0_5, %c0_6] : memref<1x32xf32, #tpu.memory_space<vmem>>, vector<1x32xf32>
    %11 = vector.broadcast %10 : vector<1x32xf32> to vector<128x32xf32>
    %12 = arith.addf %9, %11 : vector<128x32xf32>
    %cst_7 = arith.constant 0.000000e+00 : f32
    %13 = vector.broadcast %cst_7 : f32 to vector<128x32xf32>
    %14 = arith.maximumf %12, %13 : vector<128x32xf32>
    %cst_8 = arith.constant dense<0.000000e+00> : vector<128xf32>
    %15 = vector.multi_reduction <add>, %14, %cst_8 [1] : vector<128x32xf32> to vector<128xf32>
    %16 = vector.shape_cast %15 : vector<128xf32> to vector<128x1xf32>
    %cst_9 = arith.constant 3.200000e+01 : f32
    %17 = vector.broadcast %cst_9 : f32 to vector<128x1xf32>
    %18 = arith.divf %16, %17 : vector<128x1xf32>
    %19 = arith.mulf %14, %14 : vector<128x32xf32>
    %cst_10 = arith.constant dense<0.000000e+00> : vector<128xf32>
    %20 = vector.multi_reduction <add>, %19, %cst_10 [1] : vector<128x32xf32> to vector<128xf32>
    %21 = vector.shape_cast %20 : vector<128xf32> to vector<128x1xf32>
    %cst_11 = arith.constant 3.200000e+01 : f32
    %22 = vector.broadcast %cst_11 : f32 to vector<128x1xf32>
    %23 = arith.divf %21, %22 : vector<128x1xf32>
    %24 = arith.mulf %18, %18 : vector<128x1xf32>
    %25 = arith.subf %23, %24 : vector<128x1xf32>
    %cst_12 = arith.constant 9.99999974E-6 : f32
    %26 = vector.broadcast %cst_12 : f32 to vector<128x1xf32>
    %27 = arith.addf %25, %26 : vector<128x1xf32>
    %28 = math.rsqrt %27 : vector<128x1xf32>
    %29 = vector.broadcast %18 : vector<128x1xf32> to vector<128x32xf32>
    %30 = arith.subf %14, %29 : vector<128x32xf32>
    %31 = vector.broadcast %28 : vector<128x1xf32> to vector<128x32xf32>
    %32 = arith.mulf %30, %31 : vector<128x32xf32>
    %c0_13 = arith.constant 0 : index
    %c0_14 = arith.constant 0 : index
    %33 = vector.load %arg4[%c0_13, %c0_14] : memref<1x32xf32, #tpu.memory_space<vmem>>, vector<1x32xf32>
    %34 = vector.broadcast %33 : vector<1x32xf32> to vector<128x32xf32>
    %35 = arith.mulf %32, %34 : vector<128x32xf32>
    %c0_15 = arith.constant 0 : index
    %c0_16 = arith.constant 0 : index
    %36 = vector.load %arg5[%c0_15, %c0_16] : memref<1x32xf32, #tpu.memory_space<vmem>>, vector<1x32xf32>
    %37 = vector.broadcast %36 : vector<1x32xf32> to vector<128x32xf32>
    %38 = arith.addf %35, %37 : vector<128x32xf32>
    %39 = tpu.iota {dimensions = array<i32: 1>} : vector<1x128x1xi32>
    %c8_i32 = arith.constant 8 : i32
    %40 = vector.broadcast %c8_i32 : i32 to vector<1x128x1xi32>
    %41 = arith.cmpi slt, %39, %40 : vector<1x128x1xi32>
    %42 = vector.shape_cast %41 : vector<1x128x1xi1> to vector<128x1xi1>
    %cst_17 = arith.constant 0.000000e+00 : f32
    %43 = vector.shape_cast %42 : vector<128x1xi1> to vector<128x1xi1>
    %44 = vector.broadcast %43 : vector<128x1xi1> to vector<128x32xi1>
    %45 = vector.broadcast %cst_17 : f32 to vector<128x32xf32>
    %46 = arith.select %44, %38, %45 : vector<128x32xi1>, vector<128x32xf32>
    %47 = arith.truncf %46 : vector<128x32xf32> to vector<128x32xbf16>
    %48 = vector.shape_cast %47 : vector<128x32xbf16> to vector<1x128x32xbf16>
    %cst_18 = arith.constant 0.000000e+00 : bf16
    %49 = vector.broadcast %cst_18 : bf16 to vector<1x1x32xbf16>
    %50 = vector.extract_strided_slice %48 {offsets = [0, 0, 0], sizes = [1, 127, 32], strides = [1, 1, 1]} : vector<1x128x32xbf16> to vector<1x127x32xbf16>
    %51 = tpu.concatenate %49, %50 in 1 : vector<1x1x32xbf16>, vector<1x127x32xbf16> -> vector<1x128x32xbf16>
    %52 = vector.extract_strided_slice %48 {offsets = [0, 1, 0], sizes = [1, 127, 32], strides = [1, 1, 1]} : vector<1x128x32xbf16> to vector<1x127x32xbf16>
    %53 = tpu.concatenate %52, %49 in 1 : vector<1x127x32xbf16>, vector<1x1x32xbf16> -> vector<1x128x32xbf16>
    %54 = tpu.concatenate %51, %48, %53 in 2 : vector<1x128x32xbf16>, vector<1x128x32xbf16>, vector<1x128x32xbf16> -> vector<1x128x96xbf16>
    %55 = vector.shape_cast %54 : vector<1x128x96xbf16> to vector<128x96xbf16>
    %c0_19 = arith.constant 0 : index
    %c0_20 = arith.constant 0 : index
    %56 = vector.load %arg6[%c0_19, %c0_20] : memref<96x32xbf16, #tpu.memory_space<vmem>>, vector<96x32xbf16>
    %cst_21 = arith.constant dense<0.000000e+00> : vector<128x32xf32>
    %57 = tpu.matmul %55, %56, %cst_21 {dimension_numbers = #tpu.dot_dimension_numbers<[1], [0], [0], [1], [0, 0, 1, 1], [], []>} : vector<128x96xbf16>, vector<96x32xbf16>, vector<128x32xf32> -> vector<128x32xf32>
    %c0_22 = arith.constant 0 : index
    %c0_23 = arith.constant 0 : index
    %58 = vector.load %arg7[%c0_22, %c0_23] : memref<1x32xf32, #tpu.memory_space<vmem>>, vector<1x32xf32>
    %59 = vector.broadcast %58 : vector<1x32xf32> to vector<128x32xf32>
    %60 = arith.addf %57, %59 : vector<128x32xf32>
    %cst_24 = arith.constant 0.000000e+00 : f32
    %61 = vector.broadcast %cst_24 : f32 to vector<128x32xf32>
    %62 = arith.maximumf %60, %61 : vector<128x32xf32>
    %cst_25 = arith.constant dense<0.000000e+00> : vector<128xf32>
    %63 = vector.multi_reduction <add>, %62, %cst_25 [1] : vector<128x32xf32> to vector<128xf32>
    %64 = vector.shape_cast %63 : vector<128xf32> to vector<128x1xf32>
    %cst_26 = arith.constant 3.200000e+01 : f32
    %65 = vector.broadcast %cst_26 : f32 to vector<128x1xf32>
    %66 = arith.divf %64, %65 : vector<128x1xf32>
    %67 = arith.mulf %62, %62 : vector<128x32xf32>
    %cst_27 = arith.constant dense<0.000000e+00> : vector<128xf32>
    %68 = vector.multi_reduction <add>, %67, %cst_27 [1] : vector<128x32xf32> to vector<128xf32>
    %69 = vector.shape_cast %68 : vector<128xf32> to vector<128x1xf32>
    %cst_28 = arith.constant 3.200000e+01 : f32
    %70 = vector.broadcast %cst_28 : f32 to vector<128x1xf32>
    %71 = arith.divf %69, %70 : vector<128x1xf32>
    %72 = arith.mulf %66, %66 : vector<128x1xf32>
    %73 = arith.subf %71, %72 : vector<128x1xf32>
    %cst_29 = arith.constant 9.99999974E-6 : f32
    %74 = vector.broadcast %cst_29 : f32 to vector<128x1xf32>
    %75 = arith.addf %73, %74 : vector<128x1xf32>
    %76 = math.rsqrt %75 : vector<128x1xf32>
    %c0_30 = arith.constant 0 : index
    %77 = memref.load %arg9[%c0_30] : memref<2xf32, #tpu.memory_space<smem>>
    %c1 = arith.constant 1 : index
    %78 = memref.load %arg9[%c1] : memref<2xf32, #tpu.memory_space<smem>>
    %c0_31 = arith.constant 0 : index
    %c0_32 = arith.constant 0 : index
    %79 = vector.load %arg8[%c0_31, %c0_32] : memref<1x32xf32, #tpu.memory_space<vmem>>, vector<1x32xf32>
    %80 = vector.broadcast %79 : vector<1x32xf32> to vector<128x32xf32>
    %81 = arith.mulf %62, %80 : vector<128x32xf32>
    %cst_33 = arith.constant dense<0.000000e+00> : vector<128xf32>
    %82 = vector.multi_reduction <add>, %81, %cst_33 [1] : vector<128x32xf32> to vector<128xf32>
    %83 = vector.shape_cast %82 : vector<128xf32> to vector<128x1xf32>
    %84 = vector.broadcast %77 : f32 to vector<128x1xf32>
    %85 = arith.mulf %66, %84 : vector<128x1xf32>
    %86 = arith.subf %83, %85 : vector<128x1xf32>
    %87 = arith.mulf %76, %86 : vector<128x1xf32>
    %88 = vector.broadcast %78 : f32 to vector<128x1xf32>
    %89 = arith.addf %87, %88 : vector<128x1xf32>
    %90 = vector.shape_cast %89 : vector<128x1xf32> to vector<1x1x128xf32>
    %c0_34 = arith.constant 0 : index
    %c0_35 = arith.constant 0 : index
    %c0_36 = arith.constant 0 : index
    %91 = vector.load %arg10[%c0_34, %c0_35, %c0_36] : memref<1x1x128xf32, #tpu.memory_space<vmem>>, vector<1x1x128xf32>
    tpu.vector_store %arg10[%c0_34, %c0_35, %c0_36], %90 {strides = array<i32>} : memref<1x1x128xf32, #tpu.memory_space<vmem>>, vector<1x1x128xf32>,
    return
  }
  func.func @transform_0(%arg0: i32) -> (i32, i32, i32) {
    %c0_i32 = arith.constant 0 : i32
    %c0_i32_0 = arith.constant 0 : i32
    %c0_i32_1 = arith.constant 0 : i32
    return %arg0, %c0_i32, %c0_i32_0 : i32, i32, i32
  }
  func.func @transform_1(%arg0: i32) -> (i32, i32) {
    %c0_i32 = arith.constant 0 : i32
    %c0_i32_0 = arith.constant 0 : i32
    %c0_i32_1 = arith.constant 0 : i32
    return %c0_i32, %c0_i32_0 : i32, i32
  }
  func.func @transform_2(%arg0: i32) -> (i32, i32) {
    %c0_i32 = arith.constant 0 : i32
    %c0_i32_0 = arith.constant 0 : i32
    %c0_i32_1 = arith.constant 0 : i32
    return %c0_i32, %c0_i32_0 : i32, i32
  }
  func.func @transform_3(%arg0: i32) -> (i32, i32) {
    %c0_i32 = arith.constant 0 : i32
    %c0_i32_0 = arith.constant 0 : i32
    %c0_i32_1 = arith.constant 0 : i32
    return %c0_i32, %c0_i32_0 : i32, i32
  }
  func.func @transform_4(%arg0: i32) -> (i32, i32) {
    %c0_i32 = arith.constant 0 : i32
    %c0_i32_0 = arith.constant 0 : i32
    %c0_i32_1 = arith.constant 0 : i32
    return %c0_i32, %c0_i32_0 : i32, i32
  }
  func.func @transform_5(%arg0: i32) -> (i32, i32) {
    %c0_i32 = arith.constant 0 : i32
    %c0_i32_0 = arith.constant 0 : i32
    %c0_i32_1 = arith.constant 0 : i32
    return %c0_i32, %c0_i32_0 : i32, i32
  }
  func.func @transform_6(%arg0: i32) -> (i32, i32) {
    %c0_i32 = arith.constant 0 : i32
    %c0_i32_0 = arith.constant 0 : i32
    %c0_i32_1 = arith.constant 0 : i32
    return %c0_i32, %c0_i32_0 : i32, i32
  }
  func.func @transform_7(%arg0: i32) -> (i32, i32) {
    %c0_i32 = arith.constant 0 : i32
    %c0_i32_0 = arith.constant 0 : i32
    %c0_i32_1 = arith.constant 0 : i32
    return %c0_i32, %c0_i32_0 : i32, i32
  }
  func.func @transform_8(%arg0: i32) -> i32 {
    %c0_i32 = arith.constant 0 : i32
    %c0_i32_0 = arith.constant 0 : i32
    return %c0_i32 : i32
  }
  func.func @transform_9(%arg0: i32) -> (i32, i32, i32) {
    %c0_i32 = arith.constant 0 : i32
    %c0_i32_0 = arith.constant 0 : i32
    %c0_i32_1 = arith.constant 0 : i32
    return %arg0, %c0_i32, %c0_i32_0 : i32, i32, i32
  }
}

</mosaic_0001>

<llo_original>
// kernel: variance_predictor.1
$region0: #{variance_predictor.1}
  #allocation0 [shape = 'u32[]', space=smem, size = 0x4, offset = 0x4, fixed_abs, tag = 'smem constant byte address 0x4 - core index']
  #allocation1 [shape = 'u32[144,128]{1,0:T(1,128)}', space=vmem, size = 0x12000, scoped, tag = 'internal scratch']
  %s0 = inlined_call_operand.vmem [shape: bf16[2,128,32], index: 0, kind: input, shape index: {}]
  %s1 = inlined_call_operand.vmem [shape: bf16[96,32], index: 1, kind: input, shape index: {}]
  %s2 = inlined_call_operand.vmem [shape: f32[1,32], index: 2, kind: input, shape index: {}]
  %s3 = inlined_call_operand.vmem [shape: f32[1,32], index: 3, kind: input, shape index: {}]
  %s4 = inlined_call_operand.vmem [shape: f32[1,32], index: 4, kind: input, shape index: {}]
  %s5 = inlined_call_operand.vmem [shape: bf16[96,32], index: 5, kind: input, shape index: {}]
  %s6 = inlined_call_operand.vmem [shape: f32[1,32], index: 6, kind: input, shape index: {}]
  %s7 = inlined_call_operand.vmem [shape: f32[1,32], index: 7, kind: input, shape index: {}]
  %s8 = inlined_call_operand.vmem [shape: f32[2], index: 8, kind: input, shape index: {}]
  %s9 = inlined_call_operand.vmem [shape: f32[2,1,128], index: 9, kind: output, shape index: {}]
  %s10 = sld [smem:[#allocation0]]
  $region73: #{variance_predictor.1} parent=0
    _
  %s12 = ssub.s32 1, %s10
  %s13 = scalar_select 0, %s12, %s10
  $region1: #{variance_predictor.1} parent=0
    #allocation2 [shape = 'u8[512]{0}', space=smem, size = 0x200, scoped, tag = 'input window, operand 8, single buffered']
    #allocation3 [shape = 's32[2]{0}', space=sflag, size = 0x8, scoped, tag = 'scoped memory for variance_predictor.1']
    %14 = vsyncpa [#allocation3], 0
    loop: start=0, step=1, limit=4
    $region2: #{variance_predictor.1} parent=1 // loop_pre_header
      _
    $region3: #{variance_predictor.1} parent=1 // loop_header
      %s16 = sphi 0, %s20
      %p17 = scmp.ge.s32.totalorder %s16, 4
      %s26 = sphi 0, %s28
      %s29 = sphi 0, %s26
      %s30 = sphi 0, %s29
      %s46 = sphi 0, %s30
      %s50 = sphi 0, %s50
      %s52 = sphi 0, %s50
      %s53 = sphi 0, %s52
      %s67 = sphi 0, %s53
      %s71 = sphi 0, %s71
      %s73 = sphi 0, %s71
      %s74 = sphi 0, %s73
      %s88 = sphi 0, %s74
      %s92 = sphi 0, %s92
      %s94 = sphi 0, %s92
      %s95 = sphi 0, %s94
      %s109 = sphi 0, %s95
      %s113 = sphi 0, %s113
      %s115 = sphi 0, %s113
      %s116 = sphi 0, %s115
      %s130 = sphi 0, %s116
      %s134 = sphi 0, %s134
      %s136 = sphi 0, %s134
      %s137 = sphi 0, %s136
      %s151 = sphi 0, %s137
      %s155 = sphi 0, %s155
      %s157 = sphi 0, %s155
      %s158 = sphi 0, %s157
      %s172 = sphi 0, %s158
      %s176 = sphi 0, %s176
      %s178 = sphi 0, %s176
      %s179 = sphi 0, %s178
      %s193 = sphi 0, %s179
      %s197 = sphi 0, %s197
      %s199 = sphi 0, %s197
      %s200 = sphi 0, %s199
      %s214 = sphi 0, %s200
      %s220 = sphi 0, %s222
      %s223 = sphi 0, %s220
      %s224 = sphi 0, %s223
      %s240 = sphi 0, %s224
    $region4: #{variance_predictor.1} parent=1 // loop_header_branch
      %19 = sbr.rel (%p17) target = $region8
    $region5: #{variance_predictor.1} parent=1 // loop_body
      %s21 = ssub.s32 %s16, 1
      %s22 = ssub.s32 %s16, 2
      %s23 = sadd.s32 %s16, 1
      %s24 = ssub.s32 %s16, %s23
      %p25 = scmp.eq.s32.totalorder %s24, 0
      %s27 = sadd.s32 %s26, 1
      %s28 = scalar_select %p25, %s26, %s27
      %p31 = pneg %p25
      %p32 = scmp.eq.s32.totalorder %s16, 1
      %p33 = por %p31, %p32
      %p34 = scmp.ne.s32.totalorder %s26, %s29
      %p35 = scmp.eq.s32.totalorder %s16, 0
      %p36 = por %p34, %p35
      %p37 = scmp.ne.s32.totalorder %s26, %s29
      %p38 = scmp.eq.s32.totalorder %s21, 1
      %p39 = por %p37, %p38
      %p40 = scmp.ne.s32.totalorder %s29, %s30
      %p41 = scmp.eq.s32.totalorder %s21, 0
      %p42 = por %p40, %p41
      %p43 = scmp.ne.s32.totalorder %s29, %s30
      %p44 = scmp.eq.s32.totalorder %s22, 1
      %p45 = por %p43, %p44
      %p47 = scmp.ne.s32.totalorder %s30, %s46
      %p48 = scmp.eq.s32.totalorder %s22, 0
      %p49 = por %p47, %p48
      %s51 = sadd.s32 %s50, 1
      %p54 = scmp.eq.s32.totalorder %s16, 1
      %p55 = scmp.ne.s32.totalorder %s50, %s52
      %p56 = scmp.eq.s32.totalorder %s16, 0
      %p57 = por %p55, %p56
      %p58 = scmp.ne.s32.totalorder %s50, %s52
      %p59 = scmp.eq.s32.totalorder %s21, 1
      %p60 = por %p58, %p59
      %p61 = scmp.ne.s32.totalorder %s52, %s53
      %p62 = scmp.eq.s32.totalorder %s21, 0
      %p63 = por %p61, %p62
      %p64 = scmp.ne.s32.totalorder %s52, %s53
      %p65 = scmp.eq.s32.totalorder %s22, 1
      %p66 = por %p64, %p65
      %p68 = scmp.ne.s32.totalorder %s53, %s67
      %p69 = scmp.eq.s32.totalorder %s22, 0
      %p70 = por %p68, %p69
      %s72 = sadd.s32 %s71, 1
      %p75 = scmp.eq.s32.totalorder %s16, 1
      %p76 = scmp.ne.s32.totalorder %s71, %s73
      %p77 = scmp.eq.s32.totalorder %s16, 0
      %p78 = por %p76, %p77
      %p79 = scmp.ne.s32.totalorder %s71, %s73
      %p80 = scmp.eq.s32.totalorder %s21, 1
      %p81 = por %p79, %p80
      %p82 = scmp.ne.s32.totalorder %s73, %s74
      %p83 = scmp.eq.s32.totalorder %s21, 0
      %p84 = por %p82, %p83
      %p85 = scmp.ne.s32.totalorder %s73, %s74
      %p86 = scmp.eq.s32.totalorder %s22, 1
      %p87 = por %p85, %p86
      %p89 = scmp.ne.s32.totalorder %s74, %s88
      %p90 = scmp.eq.s32.totalorder %s22, 0
      %p91 = por %p89, %p90
      %s93 = sadd.s32 %s92, 1
      %p96 = scmp.eq.s32.totalorder %s16, 1
      %p97 = scmp.ne.s32.totalorder %s92, %s94
      %p98 = scmp.eq.s32.totalorder %s16, 0
      %p99 = por %p97, %p98
      %p100 = scmp.ne.s32.totalorder %s92, %s94
      %p101 = scmp.eq.s32.totalorder %s21, 1
      %p102 = por %p100, %p101
      %p103 = scmp.ne.s32.totalorder %s94, %s95
      %p104 = scmp.eq.s32.totalorder %s21, 0
      %p105 = por %p103, %p104
      %p106 = scmp.ne.s32.totalorder %s94, %s95
      %p107 = scmp.eq.s32.totalorder %s22, 1
      %p108 = por %p106, %p107
      %p110 = scmp.ne.s32.totalorder %s95, %s109
      %p111 = scmp.eq.s32.totalorder %s22, 0
      %p112 = por %p110, %p111
      %s114 = sadd.s32 %s113, 1
      %p117 = scmp.eq.s32.totalorder %s16, 1
      %p118 = scmp.ne.s32.totalorder %s113, %s115
      %p119 = scmp.eq.s32.totalorder %s16, 0
      %p120 = por %p118, %p119
      %p121 = scmp.ne.s32.totalorder %s113, %s115
      %p122 = scmp.eq.s32.totalorder %s21, 1
      %p123 = por %p121, %p122
      %p124 = scmp.ne.s32.totalorder %s115, %s116
      %p125 = scmp.eq.s32.totalorder %s21, 0
      %p126 = por %p124, %p125
      %p127 = scmp.ne.s32.totalorder %s115, %s116
      %p128 = scmp.eq.s32.totalorder %s22, 1
      %p129 = por %p127, %p128
      %p131 = scmp.ne.s32.totalorder %s116, %s130
      %p132 = scmp.eq.s32.totalorder %s22, 0
      %p133 = por %p131, %p132
      %s135 = sadd.s32 %s134, 1
      %p138 = scmp.eq.s32.totalorder %s16, 1
      %p139 = scmp.ne.s32.totalorder %s134, %s136
      %p140 = scmp.eq.s32.totalorder %s16, 0
      %p141 = por %p139, %p140
      %p142 = scmp.ne.s32.totalorder %s134, %s136
      %p143 = scmp.eq.s32.totalorder %s21, 1
      %p144 = por %p142, %p143
      %p145 = scmp.ne.s32.totalorder %s136, %s137
      %p146 = scmp.eq.s32.totalorder %s21, 0
      %p147 = por %p145, %p146
      %p148 = scmp.ne.s32.totalorder %s136, %s137
      %p149 = scmp.eq.s32.totalorder %s22, 1
      %p150 = por %p148, %p149
      %p152 = scmp.ne.s32.totalorder %s137, %s151
      %p153 = scmp.eq.s32.totalorder %s22, 0
      %p154 = por %p152, %p153
      %s156 = sadd.s32 %s155, 1
      %p159 = scmp.eq.s32.totalorder %s16, 1
      %p160 = scmp.ne.s32.totalorder %s155, %s157
      %p161 = scmp.eq.s32.totalorder %s16, 0
      %p162 = por %p160, %p161
      %p163 = scmp.ne.s32.totalorder %s155, %s157
      %p164 = scmp.eq.s32.totalorder %s21, 1
      %p165 = por %p163, %p164
      %p166 = scmp.ne.s32.totalorder %s157, %s158
      %p167 = scmp.eq.s32.totalorder %s21, 0
      %p168 = por %p166, %p167
      %p169 = scmp.ne.s32.totalorder %s157, %s158
      %p170 = scmp.eq.s32.totalorder %s22, 1
      %p171 = por %p169, %p170
      %p173 = scmp.ne.s32.totalorder %s158, %s172
      %p174 = scmp.eq.s32.totalorder %s22, 0
      %p175 = por %p173, %p174
      %s177 = sadd.s32 %s176, 1
      %p180 = scmp.eq.s32.totalorder %s16, 1
      %p181 = scmp.ne.s32.totalorder %s176, %s178
      %p182 = scmp.eq.s32.totalorder %s16, 0
      %p183 = por %p181, %p182
      %p184 = scmp.ne.s32.totalorder %s176, %s178
      %p185 = scmp.eq.s32.totalorder %s21, 1
      %p186 = por %p184, %p185
      %p187 = scmp.ne.s32.totalorder %s178, %s179
      %p188 = scmp.eq.s32.totalorder %s21, 0
      %p189 = por %p187, %p188
      %p190 = scmp.ne.s32.totalorder %s178, %s179
      %p191 = scmp.eq.s32.totalorder %s22, 1
      %p192 = por %p190, %p191
      %p194 = scmp.ne.s32.totalorder %s179, %s193
      %p195 = scmp.eq.s32.totalorder %s22, 0
      %p196 = por %p194, %p195
      %s198 = sadd.s32 %s197, 1
      %p201 = scmp.eq.s32.totalorder %s16, 1
      %p202 = scmp.ne.s32.totalorder %s197, %s199
      %p203 = scmp.eq.s32.totalorder %s16, 0
      %p204 = por %p202, %p203
      %p205 = scmp.ne.s32.totalorder %s197, %s199
      %p206 = scmp.eq.s32.totalorder %s21, 1
      %p207 = por %p205, %p206
      %p208 = scmp.ne.s32.totalorder %s199, %s200
      %p209 = scmp.eq.s32.totalorder %s21, 0
      %p210 = por %p208, %p209
      %p211 = scmp.ne.s32.totalorder %s199, %s200
      %p212 = scmp.eq.s32.totalorder %s22, 1
      %p213 = por %p211, %p212
      %p215 = scmp.ne.s32.totalorder %s200, %s214
      %p216 = scmp.eq.s32.totalorder %s22, 0
      %p217 = por %p215, %p216
      %s218 = ssub.s32 %s16, %s23
      %p219 = scmp.eq.s32.totalorder %s218, 0
      %s221 = sadd.s32 %s220, 1
      %s222 = scalar_select %p219, %s220, %s221
      %p225 = pneg %p219
      %p226 = scmp.eq.s32.totalorder %s16, 1
      %p227 = por %p225, %p226
      %p228 = scmp.ne.s32.totalorder %s220, %s223
      %p229 = scmp.eq.s32.totalorder %s16, 0
      %p230 = por %p228, %p229
      %p231 = scmp.ne.s32.totalorder %s220, %s223
      %p232 = scmp.eq.s32.totalorder %s21, 1
      %p233 = por %p231, %p232
      %p234 = scmp.ne.s32.totalorder %s223, %s224
      %p235 = scmp.eq.s32.totalorder %s21, 0
      %p236 = por %p234, %p235
      %p237 = scmp.ne.s32.totalorder %s223, %s224
      %p238 = scmp.eq.s32.totalorder %s22, 1
      %p239 = por %p237, %p238
      %p241 = scmp.ne.s32.totalorder %s224, %s240
      %p242 = scmp.eq.s32.totalorder %s22, 0
      %p243 = por %p241, %p242
      %p244 = scmp.le.s32.totalorder 1, %s16
      %p245 = scmp.lt.s32.totalorder %s16, 3
      %p246 = pnand %p244, %p245
      %p247 = pneg %p246
      // Predicated region
      $region9: #{variance_predictor.1} parent=5 // pred_check
        _
      $region10: #{variance_predictor.1} parent=5 // pred_check_branch
        %249 = sbr.rel (%p246) target = $region12
      $region11: #{variance_predictor.1} parent=5 // pred_region
        %s250 = ssub.s32 %s16, 1
        // Predicated region
        $region13: #{variance_predictor.1} parent=11 // pred_check
          %p251 = pneg %p63
        $region14: #{variance_predictor.1} parent=11 // pred_check_branch
          %253 = sbr.rel (%p251) target = $region16
        $region15: #{variance_predictor.1} parent=11 // pred_region
          _
        $region16: #{variance_predictor.1} parent=11 // pred_fallthru
          _
        // Predicated region
        $region17: #{variance_predictor.1} parent=11 // pred_check
          %p254 = pneg %p84
        $region18: #{variance_predictor.1} parent=11 // pred_check_branch
          %256 = sbr.rel (%p254) target = $region20
        $region19: #{variance_predictor.1} parent=11 // pred_region
          _
        $region20: #{variance_predictor.1} parent=11 // pred_fallthru
          _
        // Predicated region
        $region21: #{variance_predictor.1} parent=11 // pred_check
          %p257 = pneg %p105
        $region22: #{variance_predictor.1} parent=11 // pred_check_branch
          %259 = sbr.rel (%p257) target = $region24
        $region23: #{variance_predictor.1} parent=11 // pred_region
          _
        $region24: #{variance_predictor.1} parent=11 // pred_fallthru
          _
        // Predicated region
        $region25: #{variance_predictor.1} parent=11 // pred_check
          %p260 = pneg %p126
        $region26: #{variance_predictor.1} parent=11 // pred_check_branch
          %262 = sbr.rel (%p260) target = $region28
        $region27: #{variance_predictor.1} parent=11 // pred_region
          _
        $region28: #{variance_predictor.1} parent=11 // pred_fallthru
          _
        // Predicated region
        $region29: #{variance_predictor.1} parent=11 // pred_check
          %p263 = pneg %p147
        $region30: #{variance_predictor.1} parent=11 // pred_check_branch
          %265 = sbr.rel (%p263) target = $region32
        $region31: #{variance_predictor.1} parent=11 // pred_region
          _
        $region32: #{variance_predictor.1} parent=11 // pred_fallthru
          _
        // Predicated region
        $region33: #{variance_predictor.1} parent=11 // pred_check
          %p266 = pneg %p168
        $region34: #{variance_predictor.1} parent=11 // pred_check_branch
          %268 = sbr.rel (%p266) target = $region36
        $region35: #{variance_predictor.1} parent=11 // pred_region
          _
        $region36: #{variance_predictor.1} parent=11 // pred_fallthru
          _
        // Predicated region
        $region37: #{variance_predictor.1} parent=11 // pred_check
          %p269 = pneg %p189
        $region38: #{variance_predictor.1} parent=11 // pred_check_branch
          %271 = sbr.rel (%p269) target = $region40
        $region39: #{variance_predictor.1} parent=11 // pred_region
          _
        $region40: #{variance_predictor.1} parent=11 // pred_fallthru
          _
        // Predicated region
        $region41: #{variance_predictor.1} parent=11 // pred_check
          %p272 = pneg %p210
        $region42: #{variance_predictor.1} parent=11 // pred_check_branch
          %274 = sbr.rel (%p272) target = $region44
        $region43: #{variance_predictor.1} parent=11 // pred_region
          %s276 = ssub.s32 16, 16
          %277 = vsyncadd [#allocation3], %s276
          %s279 = sshll.u32 %s8, 4
          %s280 = int_to_ptr.vmem [resolvable:$true] %s279
          %282 = dma.vmem_to_smem %s280, 16, [#allocation2], [#allocation3]
        $region44: #{variance_predictor.1} parent=11 // pred_fallthru
          _
      $region12: #{variance_predictor.1} parent=5 // pred_fallthru
        _
      %p283 = scmp.lt.s32.totalorder %s16, 2
      // Predicated region
      $region45: #{variance_predictor.1} parent=5 // pred_check
        %p284 = pneg %p283
      $region46: #{variance_predictor.1} parent=5 // pred_check_branch
        %286 = sbr.rel (%p284) target = $region48
      $region47: #{variance_predictor.1} parent=5 // pred_region
        // Predicated region
        $region49: #{variance_predictor.1} parent=47 // pred_check
          %p287 = pneg %p36
        $region50: #{variance_predictor.1} parent=47 // pred_check_branch
          %289 = sbr.rel (%p287) target = $region52
        $region51: #{variance_predictor.1} parent=47 // pred_region
          %p290 = scmp.lt.s32.totalorder %s16, 1
          %s291 = scalar_select %p290, %s16, 1
          %s292 = smul.addr %s291, 16
          %s293 = smul.addr %s292, 4
          %s294 = scalar_lea.vmem %s0, %s293
        $region52: #{variance_predictor.1} parent=47 // pred_fallthru
          _
      $region48: #{variance_predictor.1} parent=5 // pred_fallthru
        _
      %p295 = scmp.le.s32.totalorder 1, %s16
      %p296 = scmp.lt.s32.totalorder %s16, 3
      %p297 = pnand %p295, %p296
      %p298 = pneg %p297
      // Predicated region
      $region53: #{variance_predictor.1} parent=5 // pred_check
        _
      $region54: #{variance_predictor.1} parent=5 // pred_check_branch
        %300 = sbr.rel (%p297) target = $region56
      $region55: #{variance_predictor.1} parent=5 // pred_region
        %s301 = ssub.s32 %s16, 1
        // Predicated region
        $region57: #{variance_predictor.1} parent=55 // pred_check
          %p302 = pneg %p210
        $region58: #{variance_predictor.1} parent=55 // pred_check_branch
          %304 = sbr.rel (%p302) target = $region60
        $region59: #{variance_predictor.1} parent=55 // pred_region
          %305 = dma.done [#allocation3], 16
        $region60: #{variance_predictor.1} parent=55 // pred_fallthru
          _
        %306 = sfence
        %p307 = scmp.lt.s32.totalorder %s21, 1
        %s308 = scalar_select %p307, %s21, 1
        %s309 = smul.addr %s308, 16
        %s310 = smul.addr %s309, 4
        %s311 = scalar_lea.vmem %s0, %s310
        %p312 = pneg %p42
        %p313 = pneg %p39
        %p314 = pneg %p63
        %p315 = pneg %p60
        %p316 = pneg %p84
        %p317 = pneg %p81
        %p318 = pneg %p105
        %p319 = pneg %p102
        %p320 = pneg %p126
        %p321 = pneg %p123
        %p322 = pneg %p147
        %p323 = pneg %p144
        %p324 = pneg %p168
        %p325 = pneg %p165
        %p326 = pneg %p189
        %p327 = pneg %p186
        %p328 = pneg %p210
        %p329 = pneg %p207
        %p330 = pneg %p236
        %p331 = pneg %p233
        %p332 = scmp.lt.s32.totalorder %s21, 1
        %s333 = scalar_select %p332, %s21, 1
        %s334 = scalar_lea.vmem %s9, %s333
        %p335 = scmp.lt.s32.totalorder %s21, 1
        %s336 = scalar_select %p335, %s21, 1
        %s337 = smul.addr %s336, 16
        %s338 = smul.addr %s337, 4
        %s339 = scalar_lea.vmem %s0, %s338
        %p340 = scmp.lt.s32.totalorder %s21, 1
        %s341 = scalar_select %p340, %s21, 1
        %s342 = scalar_lea.vmem %s9, %s341
        %v344 = vld [vmem:[%s339] sm:$0xf]
        %v345 = vld [vmem:[%s339 + $0x4] sm:$0xf]
        %v346 = vld [vmem:[%s339 + $0x8] sm:$0xf]
        %v347 = vld [vmem:[%s339 + $0xc] sm:$0xf]
        %v348 = vld [vmem:[%s339 + $0x10] sm:$0xf]
        %v349 = vld [vmem:[%s339 + $0x14] sm:$0xf]
        %v350 = vld [vmem:[%s339 + $0x18] sm:$0xf]
        %v351 = vld [vmem:[%s339 + $0x1c] sm:$0xf]
        %v352 = vld [vmem:[%s339 + $0x20] sm:$0xf]
        %v353 = vld [vmem:[%s339 + $0x24] sm:$0xf]
        %v354 = vld [vmem:[%s339 + $0x28] sm:$0xf]
        %v355 = vld [vmem:[%s339 + $0x2c] sm:$0xf]
        %v356 = vld [vmem:[%s339 + $0x30] sm:$0xf]
        %v357 = vld [vmem:[%s339 + $0x34] sm:$0xf]
        %v358 = vld [vmem:[%s339 + $0x38] sm:$0xf]
        %v359 = vld [vmem:[%s339 + $0x3c] sm:$0xf]
        %v376 = vunpack.c.l.b16 %v344
        %v377 = vunpack.c.l.b16 %v345
        %v378 = vunpack.c.l.b16 %v346
        %v379 = vunpack.c.l.b16 %v347
        %v380 = vunpack.c.l.b16 %v348
        %v381 = vunpack.c.l.b16 %v349
        %v382 = vunpack.c.l.b16 %v350
        %v383 = vunpack.c.l.b16 %v351
        %v384 = vunpack.c.l.b16 %v352
        %v385 = vunpack.c.l.b16 %v353
        %v386 = vunpack.c.l.b16 %v354
        %v387 = vunpack.c.l.b16 %v355
        %v388 = vunpack.c.l.b16 %v356
        %v389 = vunpack.c.l.b16 %v357
        %v390 = vunpack.c.l.b16 %v358
        %v391 = vunpack.c.l.b16 %v359
        %v392 = vpack.c.b16 %v377, %v376
        %v393 = vpack.c.b16 %v379, %v378
        %v394 = vpack.c.b16 %v381, %v380
        %v395 = vpack.c.b16 %v383, %v382
        %v396 = vpack.c.b16 %v385, %v384
        %v397 = vpack.c.b16 %v387, %v386
        %v398 = vpack.c.b16 %v389, %v388
        %v399 = vpack.c.b16 %v391, %v390
        %vm400 = vsmask.f32 256
        %v402 = vshrl.u32 %v392, 16
        %v404 = vrot.slane %v402, 7
        %v405 = vshll.u32 %v392, 16
        %v407 = vor.u32 %v404, %v405
        %v409 = vshrl.u32 %v393, 16
        %v411 = vrot.slane %v409, 7
        %v412 = vshll.u32 %v393, 16
        %v414 = vor.u32 %v411, %v412
        %v415 = vsel %vm400, %v404, %v414
        %v417 = vshrl.u32 %v394, 16
        %v419 = vrot.slane %v417, 7
        %v420 = vshll.u32 %v394, 16
        %v422 = vor.u32 %v419, %v420
        %v423 = vsel %vm400, %v411, %v422
        %v425 = vshrl.u32 %v395, 16
        %v427 = vrot.slane %v425, 7
        %v428 = vshll.u32 %v395, 16
        %v430 = vor.u32 %v427, %v428
        %v431 = vsel %vm400, %v419, %v430
        %v433 = vshrl.u32 %v396, 16
        %v435 = vrot.slane %v433, 7
        %v436 = vshll.u32 %v396, 16
        %v438 = vor.u32 %v435, %v436
        %v439 = vsel %vm400, %v427, %v438
        %v441 = vshrl.u32 %v397, 16
        %v443 = vrot.slane %v441, 7
        %v444 = vshll.u32 %v397, 16
        %v446 = vor.u32 %v443, %v444
        %v447 = vsel %vm400, %v435, %v446
        %v449 = vshrl.u32 %v398, 16
        %v451 = vrot.slane %v449, 7
        %v452 = vshll.u32 %v398, 16
        %v454 = vor.u32 %v451, %v452
        %v455 = vsel %vm400, %v443, %v454
        %v457 = vshrl.u32 %v399, 16
        %v459 = vrot.slane %v457, 7
        %v460 = vshll.u32 %v399, 16
        %v462 = vor.u32 %v459, %v460
        %v463 = vsel %vm400, %v451, %v462
        %vm465 = vcmask 1040384
        %vm466 = vmand %vm465, %vm400
        %v467 = vsel %vm466, 0, %v407
        %vm468 = vsmask.f32 7424
        %v469 = vrot.slane %v405, 1
        %v470 = vor.u32 %v402, %v469
        %v471 = vrot.slane %v412, 1
        %v472 = vsel %vm468, %v470, %v471
        %v473 = vor.u32 %v409, %v471
        %v474 = vrot.slane %v420, 1
        %v475 = vsel %vm468, %v473, %v474
        %v476 = vor.u32 %v417, %v474
        %v477 = vrot.slane %v428, 1
        %v478 = vsel %vm468, %v476, %v477
        %v479 = vor.u32 %v425, %v477
        %v480 = vrot.slane %v436, 1
        %v481 = vsel %vm468, %v479, %v480
        %v482 = vor.u32 %v433, %v480
        %v483 = vrot.slane %v444, 1
        %v484 = vsel %vm468, %v482, %v483
        %v485 = vor.u32 %v441, %v483
        %v486 = vrot.slane %v452, 1
        %v487 = vsel %vm468, %v485, %v486
        %v488 = vor.u32 %v449, %v486
        %v489 = vrot.slane %v460, 1
        %v490 = vsel %vm468, %v488, %v489
        %v491 = vor.u32 %v457, %v489
        %vm493 = vcmask 1047552
        %vm494 = vmand %vm493, %vm468
        %v495 = vsel %vm494, %v491, 0
        %496 = vrot.lane.b32.xlu0 %v392, 32
        %v497 = vpop.permute.xlu0 %496
        %498 = vrot.lane.b32.xlu0 %v393, 32
        %v499 = vpop.permute.xlu0 %498
        %500 = vrot.lane.b32.xlu0 %v394, 32
        %v501 = vpop.permute.xlu0 %500
        %502 = vrot.lane.b32.xlu0 %v395, 32
        %v503 = vpop.permute.xlu0 %502
        %504 = vrot.lane.b32.xlu0 %v396, 32
        %v505 = vpop.permute.xlu0 %504
        %506 = vrot.lane.b32.xlu0 %v397, 32
        %v507 = vpop.permute.xlu0 %506
        %508 = vrot.lane.b32.xlu0 %v398, 32
        %v509 = vpop.permute.xlu0 %508
        %510 = vrot.lane.b32.xlu0 %v399, 32
        %v511 = vpop.permute.xlu0 %510
        %513 = vrot.lane.b32.xlu0 %v472, 64
        %v514 = vpop.permute.xlu0 %513
        %515 = vrot.lane.b32.xlu0 %v475, 64
        %v516 = vpop.permute.xlu0 %515
        %517 = vrot.lane.b32.xlu0 %v478, 64
        %v518 = vpop.permute.xlu0 %517
        %519 = vrot.lane.b32.xlu0 %v481, 64
        %v520 = vpop.permute.xlu0 %519
        %521 = vrot.lane.b32.xlu0 %v484, 64
        %v522 = vpop.permute.xlu0 %521
        %523 = vrot.lane.b32.xlu0 %v487, 64
        %v524 = vpop.permute.xlu0 %523
        %525 = vrot.lane.b32.xlu0 %v490, 64
        %v526 = vpop.permute.xlu0 %525
        %527 = vrot.lane.b32.xlu0 %v495, 64
        %v528 = vpop.permute.xlu0 %527
        %vm529 = vcmask 261120
        %v532 = vsel %vm529, %v467, %v497
        %v535 = vsel %vm529, %v415, %v499
        %v538 = vsel %vm529, %v423, %v501
        %v541 = vsel %vm529, %v431, %v503
        %v544 = vsel %vm529, %v439, %v505
        %v547 = vsel %vm529, %v447, %v507
        %v550 = vsel %vm529, %v455, %v509
        %v553 = vsel %vm529, %v463, %v511
        %vm554 = vcmask 523264
        %v556 = vsel %vm554, %v532, %v514
        %v558 = vsel %vm554, %v535, %v516
        %v560 = vsel %vm554, %v538, %v518
        %v562 = vsel %vm554, %v541, %v520
        %v564 = vsel %vm554, %v544, %v522
        %v566 = vsel %vm554, %v547, %v524
        %v568 = vsel %vm554, %v550, %v526
        %v570 = vsel %vm554, %v553, %v528
        %v571 = vld [vmem:[%s1] sm:$0xf]
        %v572 = vld [vmem:[%s1 + $0x4] sm:$0xf]
        %v573 = vld [vmem:[%s1 + $0x8] sm:$0xf]
        %v574 = vld [vmem:[%s1 + $0xc] sm:$0xf]
        %v575 = vld [vmem:[%s1 + $0x10] sm:$0xf]
        %v576 = vld [vmem:[%s1 + $0x14] sm:$0xf]
        %v577 = vld [vmem:[%s1 + $0x18] sm:$0xf]
        %v578 = vld [vmem:[%s1 + $0x1c] sm:$0xf]
        %v579 = vld [vmem:[%s1 + $0x20] sm:$0xf]
        %v580 = vld [vmem:[%s1 + $0x24] sm:$0xf]
        %v581 = vld [vmem:[%s1 + $0x28] sm:$0xf]
        %v582 = vld [vmem:[%s1 + $0x2c] sm:$0xf]
        %v583 = vld [vmem:[%s2] sm:$0x1]
        %v585 = vlaneseq
        %v586 = vshrl.u32 %v585, 7
        %v587 = vsub.s32 0, %v586
        %v588 = vrot.slane %v583, %v587
        %v602 = vunpack.c.l.b16 %v571
        %v603 = vunpack.c.l.b16 %v572
        %v604 = vunpack.c.l.b16 %v573
        %v605 = vunpack.c.l.b16 %v574
        %v606 = vunpack.c.l.b16 %v575
        %v607 = vunpack.c.l.b16 %v576
        %v608 = vunpack.c.l.b16 %v577
        %v609 = vunpack.c.l.b16 %v578
        %v610 = vunpack.c.l.b16 %v579
        %v611 = vunpack.c.l.b16 %v580
        %v612 = vunpack.c.l.b16 %v581
        %v613 = vunpack.c.l.b16 %v582
        %v614 = vpack.c.b16 %v603, %v602
        %v615 = vpack.c.b16 %v605, %v604
        %v616 = vpack.c.b16 %v607, %v606
        %v617 = vpack.c.b16 %v609, %v608
        %v618 = vpack.c.b16 %v611, %v610
        %v619 = vpack.c.b16 %v613, %v612
        %vm626 = vcmask 785408
        %v627 = vsel %vm626, %v556, 0
        %v629 = vsel %vm626, %v558, 0
        %v631 = vsel %vm626, %v560, 0
        %v633 = vsel %vm626, %v562, 0
        %v635 = vsel %vm626, %v564, 0
        %v637 = vsel %vm626, %v566, 0
        %v639 = vsel %vm626, %v568, 0
        %v641 = vsel %vm626, %v570, 0
        %643 = vmatprep.subr.bf16.mxu0 0
        %644 = vmatpush1.bf16.msra.mxu0 0
        %645 = vmatprep.subr.bf16.mxu0 0
        %646 = vmatpush1.bf16.msra.mxu0 0
        %647 = vmatprep.subr.bf16.mxu0 0
        %648 = vmatpush1.bf16.msra.mxu0 %v619
        %649 = vmatprep.subr.bf16.mxu0 0
        %650 = vmatpush1.bf16.msra.mxu0 %v618
        %651 = vmatprep.subr.bf16.mxu0 0
        %652 = vmatpush1.bf16.msra.mxu0 %v617
        %653 = vmatprep.subr.bf16.mxu0 0
        %654 = vmatpush1.bf16.msra.mxu0 %v616
        %655 = vmatprep.subr.bf16.mxu0 0
        %656 = vmatpush1.bf16.msra.mxu0 %v615
        %657 = vmatprep.subr.bf16.mxu0 0
        %658 = vmatpush1.bf16.msra.mxu0 %v614
        %659 = vmatprep.subr.bf16.mxu0 0
        %660 = vmatpush2.bf16.msra.mxu0 0
        %661 = vmatprep.subr.bf16.mxu0 0
        %662 = vmatpush2.bf16.msra.mxu0 0
        %663 = vmatprep.subr.bf16.mxu0 0
        %664 = vmatpush2.bf16.msra.mxu0 0
        %665 = vmatprep.subr.bf16.mxu0 0
        %666 = vmatpush2.bf16.msra.mxu0 0
        %667 = vmatprep.subr.bf16.mxu0 0
        %668 = vmatpush2.bf16.msra.mxu0 0
        %669 = vmatprep.subr.bf16.mxu0 0
        %670 = vmatpush2.bf16.msra.mxu0 0
        %671 = vmatprep.subr.bf16.mxu0 0
        %672 = vmatpush2.bf16.msra.mxu0 0
        %673 = vmatprep.subr.bf16.mxu0 0
        %674 = vmatpush2.bf16.msra.mxu0 0
        %675 = vmatprep.mubr.bf16.mxu0 0
        %676 = vmatmul.mubr.bf16.gmra.mxu0 %v627
        %v677 = vpop.f32.mrf.mxu0
        %v678 = vadd.f32 %v588, %v677
        %v679 = vpop.f32.mrf.mxu0
        %v680 = vpop.f32.mrf.mxu0
        %v681 = vadd.f32 %v588, %v680
        %v682 = vpop.f32.mrf.mxu0
        %683 = vmatprep.mubr.bf16.mxu0 0
        %684 = vmatmul.mubr.bf16.gmra.mxu0 %v629
        %v685 = vpop.f32.mrf.mxu0
        %v686 = vadd.f32 %v588, %v685
        %v687 = vpop.f32.mrf.mxu0
        %v688 = vpop.f32.mrf.mxu0
        %v689 = vadd.f32 %v588, %v688
        %v690 = vpop.f32.mrf.mxu0
        %691 = vmatprep.mubr.bf16.mxu0 0
        %692 = vmatmul.mubr.bf16.gmra.mxu0 %v631
        %v693 = vpop.f32.mrf.mxu0
        %v694 = vadd.f32 %v588, %v693
        %v695 = vpop.f32.mrf.mxu0
        %v696 = vpop.f32.mrf.mxu0
        %v697 = vadd.f32 %v588, %v696
        %v698 = vpop.f32.mrf.mxu0
        %699 = vmatprep.mubr.bf16.mxu0 0
        %700 = vmatmul.mubr.bf16.gmra.mxu0 %v633
        %v701 = vpop.f32.mrf.mxu0
        %v702 = vadd.f32 %v588, %v701
        %v703 = vpop.f32.mrf.mxu0
        %v704 = vpop.f32.mrf.mxu0
        %v705 = vadd.f32 %v588, %v704
        %v706 = vpop.f32.mrf.mxu0
        %707 = vmatprep.mubr.bf16.mxu0 0
        %708 = vmatmul.mubr.bf16.gmra.mxu0 %v635
        %v709 = vpop.f32.mrf.mxu0
        %v710 = vadd.f32 %v588, %v709
        %v711 = vpop.f32.mrf.mxu0
        %v712 = vpop.f32.mrf.mxu0
        %v713 = vadd.f32 %v588, %v712
        %v714 = vpop.f32.mrf.mxu0
        %715 = vmatprep.mubr.bf16.mxu0 0
        %716 = vmatmul.mubr.bf16.gmra.mxu0 %v637
        %v717 = vpop.f32.mrf.mxu0
        %v718 = vadd.f32 %v588, %v717
        %v719 = vpop.f32.mrf.mxu0
        %v720 = vpop.f32.mrf.mxu0
        %v721 = vadd.f32 %v588, %v720
        %v722 = vpop.f32.mrf.mxu0
        %723 = vmatprep.mubr.bf16.mxu0 0
        %724 = vmatmul.mubr.bf16.gmra.mxu0 %v639
        %v725 = vpop.f32.mrf.mxu0
        %v726 = vadd.f32 %v588, %v725
        %v727 = vpop.f32.mrf.mxu0
        %v728 = vpop.f32.mrf.mxu0
        %v729 = vadd.f32 %v588, %v728
        %v730 = vpop.f32.mrf.mxu0
        %731 = vmatprep.mubr.bf16.mxu0 0
        %732 = vmatmul.mubr.bf16.gmra.mxu0 %v641
        %v733 = vpop.f32.mrf.mxu0
        %v734 = vadd.f32 %v588, %v733
        %v735 = vpop.f32.mrf.mxu0
        %v736 = vpop.f32.mrf.mxu0
        %v737 = vadd.f32 %v588, %v736
        %v738 = vpop.f32.mrf.mxu0
        %739 = vdwg.mxu0
        %v740 = vmax.f32 %v678, 0.0
        %v741 = vmax.f32 %v681, 0.0
        %v742 = vmax.f32 %v686, 0.0
        %v743 = vmax.f32 %v689, 0.0
        %v744 = vmax.f32 %v694, 0.0
        %v745 = vmax.f32 %v697, 0.0
        %v746 = vmax.f32 %v702, 0.0
        %v747 = vmax.f32 %v705, 0.0
        %v748 = vmax.f32 %v710, 0.0
        %v749 = vmax.f32 %v713, 0.0
        %v750 = vmax.f32 %v718, 0.0
        %v751 = vmax.f32 %v721, 0.0
        %v752 = vmax.f32 %v726, 0.0
        %v753 = vmax.f32 %v729, 0.0
        %v754 = vmax.f32 %v734, 0.0
        %v755 = vmax.f32 %v737, 0.0
        %v756 = vsel %vm529, %v740, 0.0
        %757 = vadd.xlane.f32.xlu0 %v756
        %v758 = vpop.xlane.xlu0 %757
        %v759 = vsel %vm529, %v741, 0.0
        %760 = vadd.xlane.f32.xlu0 %v759
        %v761 = vpop.xlane.xlu0 %760
        %v762 = vsel %vm529, %v742, 0.0
        %763 = vadd.xlane.f32.xlu0 %v762
        %v764 = vpop.xlane.xlu0 %763
        %v765 = vsel %vm529, %v743, 0.0
        %766 = vadd.xlane.f32.xlu0 %v765
        %v767 = vpop.xlane.xlu0 %766
        %v768 = vsel %vm529, %v744, 0.0
        %769 = vadd.xlane.f32.xlu0 %v768
        %v770 = vpop.xlane.xlu0 %769
        %v771 = vsel %vm529, %v745, 0.0
        %772 = vadd.xlane.f32.xlu0 %v771
        %v773 = vpop.xlane.xlu0 %772
        %v774 = vsel %vm529, %v746, 0.0
        %775 = vadd.xlane.f32.xlu0 %v774
        %v776 = vpop.xlane.xlu0 %775
        %v777 = vsel %vm529, %v747, 0.0
        %778 = vadd.xlane.f32.xlu0 %v777
        %v779 = vpop.xlane.xlu0 %778
        %v780 = vsel %vm529, %v748, 0.0
        %781 = vadd.xlane.f32.xlu0 %v780
        %v782 = vpop.xlane.xlu0 %781
        %v783 = vsel %vm529, %v749, 0.0
        %784 = vadd.xlane.f32.xlu0 %v783
        %v785 = vpop.xlane.xlu0 %784
        %v786 = vsel %vm529, %v750, 0.0
        %787 = vadd.xlane.f32.xlu0 %v786
        %v788 = vpop.xlane.xlu0 %787
        %v789 = vsel %vm529, %v751, 0.0
        %790 = vadd.xlane.f32.xlu0 %v789
        %v791 = vpop.xlane.xlu0 %790
        %v792 = vsel %vm529, %v752, 0.0
        %793 = vadd.xlane.f32.xlu0 %v792
        %v794 = vpop.xlane.xlu0 %793
        %v795 = vsel %vm529, %v753, 0.0
        %796 = vadd.xlane.f32.xlu0 %v795
        %v797 = vpop.xlane.xlu0 %796
        %v798 = vsel %vm529, %v754, 0.0
        %799 = vadd.xlane.f32.xlu0 %v798
        %v800 = vpop.xlane.xlu0 %799
        %v801 = vsel %vm529, %v755, 0.0
        %802 = vadd.xlane.f32.xlu0 %v801
        %v803 = vpop.xlane.xlu0 %802
        %v804 = vrcp.pop 32.0
        %v805 = vmul.f32 %v758, %v804
        %v806 = vmul.f32 %v761, %v804
        %v807 = vmul.f32 %v764, %v804
        %v808 = vmul.f32 %v767, %v804
        %v809 = vmul.f32 %v770, %v804
        %v810 = vmul.f32 %v773, %v804
        %v811 = vmul.f32 %v776, %v804
        %v812 = vmul.f32 %v779, %v804
        %v813 = vmul.f32 %v782, %v804
        %v814 = vmul.f32 %v785, %v804
        %v815 = vmul.f32 %v788, %v804
        %v816 = vmul.f32 %v791, %v804
        %v817 = vmul.f32 %v794, %v804
        %v818 = vmul.f32 %v797, %v804
        %v819 = vmul.f32 %v800, %v804
        %v820 = vmul.f32 %v803, %v804
        %v821 = vmul.f32 %v740, %v740
        %v822 = vmul.f32 %v741, %v741
        %v823 = vmul.f32 %v742, %v742
        %v824 = vmul.f32 %v743, %v743
        %v825 = vmul.f32 %v744, %v744
        %v826 = vmul.f32 %v745, %v745
        %v827 = vmul.f32 %v746, %v746
        %v828 = vmul.f32 %v747, %v747
        %v829 = vmul.f32 %v748, %v748
        %v830 = vmul.f32 %v749, %v749
        %v831 = vmul.f32 %v750, %v750
        %v832 = vmul.f32 %v751, %v751
        %v833 = vmul.f32 %v752, %v752
        %v834 = vmul.f32 %v753, %v753
        %v835 = vmul.f32 %v754, %v754
        %v836 = vmul.f32 %v755, %v755
        %v837 = vsel %vm529, %v821, 0.0
        %838 = vadd.xlane.f32.xlu0 %v837
        %v839 = vpop.xlane.xlu0 %838
        %v840 = vsel %vm529, %v822, 0.0
        %841 = vadd.xlane.f32.xlu0 %v840
        %v842 = vpop.xlane.xlu0 %841
        %v843 = vsel %vm529, %v823, 0.0
        %844 = vadd.xlane.f32.xlu0 %v843
        %v845 = vpop.xlane.xlu0 %844
        %v846 = vsel %vm529, %v824, 0.0
        %847 = vadd.xlane.f32.xlu0 %v846
        %v848 = vpop.xlane.xlu0 %847
        %v849 = vsel %vm529, %v825, 0.0
        %850 = vadd.xlane.f32.xlu0 %v849
        %v851 = vpop.xlane.xlu0 %850
        %v852 = vsel %vm529, %v826, 0.0
        %853 = vadd.xlane.f32.xlu0 %v852
        %v854 = vpop.xlane.xlu0 %853
        %v855 = vsel %vm529, %v827, 0.0
        %856 = vadd.xlane.f32.xlu0 %v855
        %v857 = vpop.xlane.xlu0 %856
        %v858 = vsel %vm529, %v828, 0.0
        %859 = vadd.xlane.f32.xlu0 %v858
        %v860 = vpop.xlane.xlu0 %859
        %v861 = vsel %vm529, %v829, 0.0
        %862 = vadd.xlane.f32.xlu0 %v861
        %v863 = vpop.xlane.xlu0 %862
        %v864 = vsel %vm529, %v830, 0.0
        %865 = vadd.xlane.f32.xlu0 %v864
        %v866 = vpop.xlane.xlu0 %865
        %v867 = vsel %vm529, %v831, 0.0
        %868 = vadd.xlane.f32.xlu0 %v867
        %v869 = vpop.xlane.xlu0 %868
        %v870 = vsel %vm529, %v832, 0.0
        %871 = vadd.xlane.f32.xlu0 %v870
        %v872 = vpop.xlane.xlu0 %871
        %v873 = vsel %vm529, %v833, 0.0
        %874 = vadd.xlane.f32.xlu0 %v873
        %v875 = vpop.xlane.xlu0 %874
        %v876 = vsel %vm529, %v834, 0.0
        %877 = vadd.xlane.f32.xlu0 %v876
        %v878 = vpop.xlane.xlu0 %877
        %v879 = vsel %vm529, %v835, 0.0
        %880 = vadd.xlane.f32.xlu0 %v879
        %v881 = vpop.xlane.xlu0 %880
        %v882 = vsel %vm529, %v836, 0.0
        %883 = vadd.xlane.f32.xlu0 %v882
        %v884 = vpop.xlane.xlu0 %883
        %v885 = vmul.f32 %v839, %v804
        %v886 = vmul.f32 %v842, %v804
        %v887 = vmul.f32 %v845, %v804
        %v888 = vmul.f32 %v848, %v804
        %v889 = vmul.f32 %v851, %v804
        %v890 = vmul.f32 %v854, %v804
        %v891 = vmul.f32 %v857, %v804
        %v892 = vmul.f32 %v860, %v804
        %v893 = vmul.f32 %v863, %v804
        %v894 = vmul.f32 %v866, %v804
        %v895 = vmul.f32 %v869, %v804
        %v896 = vmul.f32 %v872, %v804
        %v897 = vmul.f32 %v875, %v804
        %v898 = vmul.f32 %v878, %v804
        %v899 = vmul.f32 %v881, %v804
        %v900 = vmul.f32 %v884, %v804
        %v901 = vmul.f32 %v805, %v805
        %v902 = vmul.f32 %v806, %v806
        %v903 = vmul.f32 %v807, %v807
        %v904 = vmul.f32 %v808, %v808
        %v905 = vmul.f32 %v809, %v809
        %v906 = vmul.f32 %v810, %v810
        %v907 = vmul.f32 %v811, %v811
        %v908 = vmul.f32 %v812, %v812
        %v909 = vmul.f32 %v813, %v813
        %v910 = vmul.f32 %v814, %v814
        %v911 = vmul.f32 %v815, %v815
        %v912 = vmul.f32 %v816, %v816
        %v913 = vmul.f32 %v817, %v817
        %v914 = vmul.f32 %v818, %v818
        %v915 = vmul.f32 %v819, %v819
        %v916 = vmul.f32 %v820, %v820
        %v917 = vsub.f32 %v885, %v901
        %v918 = vsub.f32 %v886, %v902
        %v919 = vsub.f32 %v887, %v903
        %v920 = vsub.f32 %v888, %v904
        %v921 = vsub.f32 %v889, %v905
        %v922 = vsub.f32 %v890, %v906
        %v923 = vsub.f32 %v891, %v907
        %v924 = vsub.f32 %v892, %v908
        %v925 = vsub.f32 %v893, %v909
        %v926 = vsub.f32 %v894, %v910
        %v927 = vsub.f32 %v895, %v911
        %v928 = vsub.f32 %v896, %v912
        %v929 = vsub.f32 %v897, %v913
        %v930 = vsub.f32 %v898, %v914
        %v931 = vsub.f32 %v899, %v915
        %v932 = vsub.f32 %v900, %v916
        %v933 = vadd.f32 %v917, 1e-05
        %v934 = vadd.f32 %v918, 1e-05
        %v935 = vadd.f32 %v919, 1e-05
        %v936 = vadd.f32 %v920, 1e-05
        %v937 = vadd.f32 %v921, 1e-05
        %v938 = vadd.f32 %v922, 1e-05
        %v939 = vadd.f32 %v923, 1e-05
        %v940 = vadd.f32 %v924, 1e-05
        %v941 = vadd.f32 %v925, 1e-05
        %v942 = vadd.f32 %v926, 1e-05
        %v943 = vadd.f32 %v927, 1e-05
        %v944 = vadd.f32 %v928, 1e-05
        %v945 = vadd.f32 %v929, 1e-05
        %v946 = vadd.f32 %v930, 1e-05
        %v947 = vadd.f32 %v931, 1e-05
        %v948 = vadd.f32 %v932, 1e-05
        %v949 = vrsqrt.pop %v933
        %v950 = vrsqrt.pop %v934
        %v951 = vrsqrt.pop %v935
        %v952 = vrsqrt.pop %v936
        %v953 = vrsqrt.pop %v937
        %v954 = vrsqrt.pop %v938
        %v955 = vrsqrt.pop %v939
        %v956 = vrsqrt.pop %v940
        %v957 = vrsqrt.pop %v941
        %v958 = vrsqrt.pop %v942
        %v959 = vrsqrt.pop %v943
        %v960 = vrsqrt.pop %v944
        %v961 = vrsqrt.pop %v945
        %v962 = vrsqrt.pop %v946
        %v963 = vrsqrt.pop %v947
        %v964 = vrsqrt.pop %v948
        %v965 = vsub.f32 %v740, %v805
        %v966 = vsub.f32 %v741, %v806
        %v967 = vsub.f32 %v742, %v807
        %v968 = vsub.f32 %v743, %v808
        %v969 = vsub.f32 %v744, %v809
        %v970 = vsub.f32 %v745, %v810
        %v971 = vsub.f32 %v746, %v811
        %v972 = vsub.f32 %v747, %v812
        %v973 = vsub.f32 %v748, %v813
        %v974 = vsub.f32 %v749, %v814
        %v975 = vsub.f32 %v750, %v815
        %v976 = vsub.f32 %v751, %v816
        %v977 = vsub.f32 %v752, %v817
        %v978 = vsub.f32 %v753, %v818
        %v979 = vsub.f32 %v754, %v819
        %v980 = vsub.f32 %v755, %v820
        %v981 = vmul.f32 %v965, %v949
        %v982 = vmul.f32 %v966, %v950
        %v983 = vmul.f32 %v967, %v951
        %v984 = vmul.f32 %v968, %v952
        %v985 = vmul.f32 %v969, %v953
        %v986 = vmul.f32 %v970, %v954
        %v987 = vmul.f32 %v971, %v955
        %v988 = vmul.f32 %v972, %v956
        %v989 = vmul.f32 %v973, %v957
        %v990 = vmul.f32 %v974, %v958
        %v991 = vmul.f32 %v975, %v959
        %v992 = vmul.f32 %v976, %v960
        %v993 = vmul.f32 %v977, %v961
        %v994 = vmul.f32 %v978, %v962
        %v995 = vmul.f32 %v979, %v963
        %v996 = vmul.f32 %v980, %v964
        %v997 = vld [vmem:[%s3] sm:$0x1]
        %v999 = vlaneseq
        %v1000 = vshrl.u32 %v999, 7
        %v1001 = vsub.s32 0, %v1000
        %v1002 = vrot.slane %v997, %v1001
        %v1004 = vmul.f32 %v981, %v1002
        %v1005 = vmul.f32 %v982, %v1002
        %v1006 = vmul.f32 %v983, %v1002
        %v1007 = vmul.f32 %v984, %v1002
        %v1008 = vmul.f32 %v985, %v1002
        %v1009 = vmul.f32 %v986, %v1002
        %v1010 = vmul.f32 %v987, %v1002
        %v1011 = vmul.f32 %v988, %v1002
        %v1012 = vmul.f32 %v989, %v1002
        %v1013 = vmul.f32 %v990, %v1002
        %v1014 = vmul.f32 %v991, %v1002
        %v1015 = vmul.f32 %v992, %v1002
        %v1016 = vmul.f32 %v993, %v1002
        %v1017 = vmul.f32 %v994, %v1002
        %v1018 = vmul.f32 %v995, %v1002
        %v1019 = vmul.f32 %v996, %v1002
        %v1020 = vld [vmem:[%s4] sm:$0x1]
        %v1022 = vlaneseq
        %v1023 = vshrl.u32 %v1022, 7
        %v1024 = vsub.s32 0, %v1023
        %v1025 = vrot.slane %v1020, %v1024
        %v1027 = vadd.f32 %v1004, %v1025
        %v1028 = vadd.f32 %v1005, %v1025
        %v1029 = vadd.f32 %v1006, %v1025
        %v1030 = vadd.f32 %v1007, %v1025
        %v1031 = vadd.f32 %v1008, %v1025
        %v1032 = vadd.f32 %v1009, %v1025
        %v1033 = vadd.f32 %v1010, %v1025
        %v1034 = vadd.f32 %v1011, %v1025
        %v1035 = vadd.f32 %v1012, %v1025
        %v1036 = vadd.f32 %v1013, %v1025
        %v1037 = vadd.f32 %v1014, %v1025
        %v1038 = vadd.f32 %v1015, %v1025
        %v1039 = vadd.f32 %v1016, %v1025
        %v1040 = vadd.f32 %v1017, %v1025
        %v1041 = vadd.f32 %v1018, %v1025
        %v1042 = vadd.f32 %v1019, %v1025
        %v1043 = vlaneseq
        %v1044 = vshrl.u32 %v1043, 7
        %v1045 = vadd.s32 %v1044, 8
        %v1046 = vadd.s32 %v1044, 16
        %v1047 = vadd.s32 %v1044, 24
        %v1048 = vadd.s32 %v1044, 32
        %v1049 = vadd.s32 %v1044, 40
        %v1050 = vadd.s32 %v1044, 48
        %v1051 = vadd.s32 %v1044, 56
        %v1052 = vadd.s32 %v1044, 64
        %v1053 = vadd.s32 %v1044, 72
        %v1054 = vadd.s32 %v1044, 80
        %v1055 = vadd.s32 %v1044, 88
        %v1056 = vadd.s32 %v1044, 96
        %v1057 = vadd.s32 %v1044, 104
        %v1058 = vadd.s32 %v1044, 112
        %v1059 = vadd.s32 %v1044, 120
        %vm1060 = vcmp.lt.s32.totalorder %v1044, 8
        %vm1061 = vcmp.lt.s32.totalorder %v1045, 8
        %vm1062 = vcmp.lt.s32.totalorder %v1046, 8
        %vm1063 = vcmp.lt.s32.totalorder %v1047, 8
        %vm1064 = vcmp.lt.s32.totalorder %v1048, 8
        %vm1065 = vcmp.lt.s32.totalorder %v1049, 8
        %vm1066 = vcmp.lt.s32.totalorder %v1050, 8
        %vm1067 = vcmp.lt.s32.totalorder %v1051, 8
        %vm1068 = vcmp.lt.s32.totalorder %v1052, 8
        %vm1069 = vcmp.lt.s32.totalorder %v1053, 8
        %vm1070 = vcmp.lt.s32.totalorder %v1054, 8
        %vm1071 = vcmp.lt.s32.totalorder %v1055, 8
        %vm1072 = vcmp.lt.s32.totalorder %v1056, 8
        %vm1073 = vcmp.lt.s32.totalorder %v1057, 8
        %vm1074 = vcmp.lt.s32.totalorder %v1058, 8
        %vm1075 = vcmp.lt.s32.totalorder %v1059, 8
        %v1076 = vsel %vm1060, 1, 0
        %v1077 = vsel %vm1061, 1, 0
        %v1078 = vsel %vm1062, 1, 0
        %v1079 = vsel %vm1063, 1, 0
        %v1080 = vsel %vm1064, 1, 0
        %v1081 = vsel %vm1065, 1, 0
        %v1082 = vsel %vm1066, 1, 0
        %v1083 = vsel %vm1067, 1, 0
        %v1084 = vsel %vm1068, 1, 0
        %v1085 = vsel %vm1069, 1, 0
        %v1086 = vsel %vm1070, 1, 0
        %v1087 = vsel %vm1071, 1, 0
        %v1088 = vsel %vm1072, 1, 0
        %v1089 = vsel %vm1073, 1, 0
        %v1090 = vsel %vm1074, 1, 0
        %v1091 = vsel %vm1075, 1, 0
        %vm1092 = vcmp.eq.s32.totalorder %v1076, 1
        %vm1093 = vcmp.eq.s32.totalorder %v1077, 1
        %vm1094 = vcmp.eq.s32.totalorder %v1078, 1
        %vm1095 = vcmp.eq.s32.totalorder %v1079, 1
        %vm1096 = vcmp.eq.s32.totalorder %v1080, 1
        %vm1097 = vcmp.eq.s32.totalorder %v1081, 1
        %vm1098 = vcmp.eq.s32.totalorder %v1082, 1
        %vm1099 = vcmp.eq.s32.totalorder %v1083, 1
        %vm1100 = vcmp.eq.s32.totalorder %v1084, 1
        %vm1101 = vcmp.eq.s32.totalorder %v1085, 1
        %vm1102 = vcmp.eq.s32.totalorder %v1086, 1
        %vm1103 = vcmp.eq.s32.totalorder %v1087, 1
        %vm1104 = vcmp.eq.s32.totalorder %v1088, 1
        %vm1105 = vcmp.eq.s32.totalorder %v1089, 1
        %vm1106 = vcmp.eq.s32.totalorder %v1090, 1
        %vm1107 = vcmp.eq.s32.totalorder %v1091, 1
        %v1108 = vsel %vm1092, %v1027, 0.0
        %v1109 = vsel %vm1093, %v1028, 0.0
        %v1110 = vsel %vm1094, %v1029, 0.0
        %v1111 = vsel %vm1095, %v1030, 0.0
        %v1112 = vsel %vm1096, %v1031, 0.0
        %v1113 = vsel %vm1097, %v1032, 0.0
        %v1114 = vsel %vm1098, %v1033, 0.0
        %v1115 = vsel %vm1099, %v1034, 0.0
        %v1116 = vsel %vm1100, %v1035, 0.0
        %v1117 = vsel %vm1101, %v1036, 0.0
        %v1118 = vsel %vm1102, %v1037, 0.0
        %v1119 = vsel %vm1103, %v1038, 0.0
        %v1120 = vsel %vm1104, %v1039, 0.0
        %v1121 = vsel %vm1105, %v1040, 0.0
        %v1122 = vsel %vm1106, %v1041, 0.0
        %v1123 = vsel %vm1107, %v1042, 0.0
        %v1124 = vpack.c.bf16 %v1109, %v1108
        %v1125 = vpack.c.bf16 %v1111, %v1110
        %v1126 = vpack.c.bf16 %v1113, %v1112
        %v1127 = vpack.c.bf16 %v1115, %v1114
        %v1128 = vpack.c.bf16 %v1117, %v1116
        %v1129 = vpack.c.bf16 %v1119, %v1118
        %v1130 = vpack.c.bf16 %v1121, %v1120
        %v1131 = vpack.c.bf16 %v1123, %v1122
        %v1133 = vshrl.u32 %v1124, 16
        %v1135 = vrot.slane %v1133, 7
        %v1136 = vshll.u32 %v1124, 16
        %v1138 = vor.u32 %v1135, %v1136
        %v1140 = vshrl.u32 %v1125, 16
        %v1142 = vrot.slane %v1140, 7
        %v1143 = vshll.u32 %v1125, 16
        %v1145 = vor.u32 %v1142, %v1143
        %v1146 = vsel %vm400, %v1135, %v1145
        %v1148 = vshrl.u32 %v1126, 16
        %v1150 = vrot.slane %v1148, 7
        %v1151 = vshll.u32 %v1126, 16
        %v1153 = vor.u32 %v1150, %v1151
        %v1154 = vsel %vm400, %v1142, %v1153
        %v1156 = vshrl.u32 %v1127, 16
        %v1158 = vrot.slane %v1156, 7
        %v1159 = vshll.u32 %v1127, 16
        %v1161 = vor.u32 %v1158, %v1159
        %v1162 = vsel %vm400, %v1150, %v1161
        %v1164 = vshrl.u32 %v1128, 16
        %v1166 = vrot.slane %v1164, 7
        %v1167 = vshll.u32 %v1128, 16
        %v1169 = vor.u32 %v1166, %v1167
        %v1170 = vsel %vm400, %v1158, %v1169
        %v1172 = vshrl.u32 %v1129, 16
        %v1174 = vrot.slane %v1172, 7
        %v1175 = vshll.u32 %v1129, 16
        %v1177 = vor.u32 %v1174, %v1175
        %v1178 = vsel %vm400, %v1166, %v1177
        %v1180 = vshrl.u32 %v1130, 16
        %v1182 = vrot.slane %v1180, 7
        %v1183 = vshll.u32 %v1130, 16
        %v1185 = vor.u32 %v1182, %v1183
        %v1186 = vsel %vm400, %v1174, %v1185
        %v1188 = vshrl.u32 %v1131, 16
        %v1190 = vrot.slane %v1188, 7
        %v1191 = vshll.u32 %v1131, 16
        %v1193 = vor.u32 %v1190, %v1191
        %v1194 = vsel %vm400, %v1182, %v1193
        %v1196 = vsel %vm466, 0, %v1138
        %v1197 = vrot.slane %v1136, 1
        %v1198 = vor.u32 %v1133, %v1197
        %v1199 = vrot.slane %v1143, 1
        %v1200 = vsel %vm468, %v1198, %v1199
        %v1201 = vor.u32 %v1140, %v1199
        %v1202 = vrot.slane %v1151, 1
        %v1203 = vsel %vm468, %v1201, %v1202
        %v1204 = vor.u32 %v1148, %v1202
        %v1205 = vrot.slane %v1159, 1
        %v1206 = vsel %vm468, %v1204, %v1205
        %v1207 = vor.u32 %v1156, %v1205
        %v1208 = vrot.slane %v1167, 1
        %v1209 = vsel %vm468, %v1207, %v1208
        %v1210 = vor.u32 %v1164, %v1208
        %v1211 = vrot.slane %v1175, 1
        %v1212 = vsel %vm468, %v1210, %v1211
        %v1213 = vor.u32 %v1172, %v1211
        %v1214 = vrot.slane %v1183, 1
        %v1215 = vsel %vm468, %v1213, %v1214
        %v1216 = vor.u32 %v1180, %v1214
        %v1217 = vrot.slane %v1191, 1
        %v1218 = vsel %vm468, %v1216, %v1217
        %v1219 = vor.u32 %v1188, %v1217
        %v1221 = vsel %vm494, %v1219, 0
        %1230 = vrot.lane.b32.xlu0 %v1124, 32
        %v1231 = vpop.permute.xlu0 %1230
        %1232 = vrot.lane.b32.xlu0 %v1125, 32
        %v1233 = vpop.permute.xlu0 %1232
        %1234 = vrot.lane.b32.xlu0 %v1126, 32
        %v1235 = vpop.permute.xlu0 %1234
        %1236 = vrot.lane.b32.xlu0 %v1127, 32
        %v1237 = vpop.permute.xlu0 %1236
        %1238 = vrot.lane.b32.xlu0 %v1128, 32
        %v1239 = vpop.permute.xlu0 %1238
        %1240 = vrot.lane.b32.xlu0 %v1129, 32
        %v1241 = vpop.permute.xlu0 %1240
        %1242 = vrot.lane.b32.xlu0 %v1130, 32
        %v1243 = vpop.permute.xlu0 %1242
        %1244 = vrot.lane.b32.xlu0 %v1131, 32
        %v1245 = vpop.permute.xlu0 %1244
        %1247 = vrot.lane.b32.xlu0 %v1200, 64
        %v1248 = vpop.permute.xlu0 %1247
        %1249 = vrot.lane.b32.xlu0 %v1203, 64
        %v1250 = vpop.permute.xlu0 %1249
        %1251 = vrot.lane.b32.xlu0 %v1206, 64
        %v1252 = vpop.permute.xlu0 %1251
        %1253 = vrot.lane.b32.xlu0 %v1209, 64
        %v1254 = vpop.permute.xlu0 %1253
        %1255 = vrot.lane.b32.xlu0 %v1212, 64
        %v1256 = vpop.permute.xlu0 %1255
        %1257 = vrot.lane.b32.xlu0 %v1215, 64
        %v1258 = vpop.permute.xlu0 %1257
        %1259 = vrot.lane.b32.xlu0 %v1218, 64
        %v1260 = vpop.permute.xlu0 %1259
        %1261 = vrot.lane.b32.xlu0 %v1221, 64
        %v1262 = vpop.permute.xlu0 %1261
        %v1265 = vsel %vm529, %v1196, %v1231
        %v1268 = vsel %vm529, %v1146, %v1233
        %v1271 = vsel %vm529, %v1154, %v1235
        %v1274 = vsel %vm529, %v1162, %v1237
        %v1277 = vsel %vm529, %v1170, %v1239
        %v1280 = vsel %vm529, %v1178, %v1241
        %v1283 = vsel %vm529, %v1186, %v1243
        %v1286 = vsel %vm529, %v1194, %v1245
        %v1288 = vsel %vm554, %v1265, %v1248
        %v1290 = vsel %vm554, %v1268, %v1250
        %v1292 = vsel %vm554, %v1271, %v1252
        %v1294 = vsel %vm554, %v1274, %v1254
        %v1296 = vsel %vm554, %v1277, %v1256
        %v1298 = vsel %vm554, %v1280, %v1258
        %v1300 = vsel %vm554, %v1283, %v1260
        %v1302 = vsel %vm554, %v1286, %v1262
        %v1303 = vld [vmem:[%s5] sm:$0xf]
        %v1304 = vld [vmem:[%s5 + $0x4] sm:$0xf]
        %v1305 = vld [vmem:[%s5 + $0x8] sm:$0xf]
        %v1306 = vld [vmem:[%s5 + $0xc] sm:$0xf]
        %v1307 = vld [vmem:[%s5 + $0x10] sm:$0xf]
        %v1308 = vld [vmem:[%s5 + $0x14] sm:$0xf]
        %v1309 = vld [vmem:[%s5 + $0x18] sm:$0xf]
        %v1310 = vld [vmem:[%s5 + $0x1c] sm:$0xf]
        %v1311 = vld [vmem:[%s5 + $0x20] sm:$0xf]
        %v1312 = vld [vmem:[%s5 + $0x24] sm:$0xf]
        %v1313 = vld [vmem:[%s5 + $0x28] sm:$0xf]
        %v1314 = vld [vmem:[%s5 + $0x2c] sm:$0xf]
        %v1315 = vld [vmem:[%s6] sm:$0x1]
        %v1317 = vlaneseq
        %v1318 = vshrl.u32 %v1317, 7
        %v1319 = vsub.s32 0, %v1318
        %v1320 = vrot.slane %v1315, %v1319
        %v1334 = vunpack.c.l.b16 %v1303
        %v1335 = vunpack.c.l.b16 %v1304
        %v1336 = vunpack.c.l.b16 %v1305
        %v1337 = vunpack.c.l.b16 %v1306
        %v1338 = vunpack.c.l.b16 %v1307
        %v1339 = vunpack.c.l.b16 %v1308
        %v1340 = vunpack.c.l.b16 %v1309
        %v1341 = vunpack.c.l.b16 %v1310
        %v1342 = vunpack.c.l.b16 %v1311
        %v1343 = vunpack.c.l.b16 %v1312
        %v1344 = vunpack.c.l.b16 %v1313
        %v1345 = vunpack.c.l.b16 %v1314
        %v1346 = vpack.c.b16 %v1335, %v1334
        %v1347 = vpack.c.b16 %v1337, %v1336
        %v1348 = vpack.c.b16 %v1339, %v1338
        %v1349 = vpack.c.b16 %v1341, %v1340
        %v1350 = vpack.c.b16 %v1343, %v1342
        %v1351 = vpack.c.b16 %v1345, %v1344
        %v1358 = vsel %vm626, %v1288, 0
        %v1360 = vsel %vm626, %v1290, 0
        %v1362 = vsel %vm626, %v1292, 0
        %v1364 = vsel %vm626, %v1294, 0
        %v1366 = vsel %vm626, %v1296, 0
        %v1368 = vsel %vm626, %v1298, 0
        %v1370 = vsel %vm626, %v1300, 0
        %v1372 = vsel %vm626, %v1302, 0
        %1374 = vmatprep.subr.bf16.mxu0 0
        %1375 = vmatpush1.bf16.msra.mxu0 0
        %1376 = vmatprep.subr.bf16.mxu0 0
        %1377 = vmatpush1.bf16.msra.mxu0 0
        %1378 = vmatprep.subr.bf16.mxu0 0
        %1379 = vmatpush1.bf16.msra.mxu0 %v1351
        %1380 = vmatprep.subr.bf16.mxu0 0
        %1381 = vmatpush1.bf16.msra.mxu0 %v1350
        %1382 = vmatprep.subr.bf16.mxu0 0
        %1383 = vmatpush1.bf16.msra.mxu0 %v1349
        %1384 = vmatprep.subr.bf16.mxu0 0
        %1385 = vmatpush1.bf16.msra.mxu0 %v1348
        %1386 = vmatprep.subr.bf16.mxu0 0
        %1387 = vmatpush1.bf16.msra.mxu0 %v1347
        %1388 = vmatprep.subr.bf16.mxu0 0
        %1389 = vmatpush1.bf16.msra.mxu0 %v1346
        %1390 = vmatprep.subr.bf16.mxu0 0
        %1391 = vmatpush2.bf16.msra.mxu0 0
        %1392 = vmatprep.subr.bf16.mxu0 0
        %1393 = vmatpush2.bf16.msra.mxu0 0
        %1394 = vmatprep.subr.bf16.mxu0 0
        %1395 = vmatpush2.bf16.msra.mxu0 0
        %1396 = vmatprep.subr.bf16.mxu0 0
        %1397 = vmatpush2.bf16.msra.mxu0 0
        %1398 = vmatprep.subr.bf16.mxu0 0
        %1399 = vmatpush2.bf16.msra.mxu0 0
        %1400 = vmatprep.subr.bf16.mxu0 0
        %1401 = vmatpush2.bf16.msra.mxu0 0
        %1402 = vmatprep.subr.bf16.mxu0 0
        %1403 = vmatpush2.bf16.msra.mxu0 0
        %1404 = vmatprep.subr.bf16.mxu0 0
        %1405 = vmatpush2.bf16.msra.mxu0 0
        %1406 = vmatprep.mubr.bf16.mxu0 0
        %1407 = vmatmul.mubr.bf16.gmra.mxu0 %v1358
        %v1408 = vpop.f32.mrf.mxu0
        %v1409 = vadd.f32 %v1320, %v1408
        %v1410 = vpop.f32.mrf.mxu0
        %v1411 = vpop.f32.mrf.mxu0
        %v1412 = vadd.f32 %v1320, %v1411
        %v1413 = vpop.f32.mrf.mxu0
        %1414 = vmatprep.mubr.bf16.mxu0 0
        %1415 = vmatmul.mubr.bf16.gmra.mxu0 %v1360
        %v1416 = vpop.f32.mrf.mxu0
        %v1417 = vadd.f32 %v1320, %v1416
        %v1418 = vpop.f32.mrf.mxu0
        %v1419 = vpop.f32.mrf.mxu0
        %v1420 = vadd.f32 %v1320, %v1419
        %v1421 = vpop.f32.mrf.mxu0
        %1422 = vmatprep.mubr.bf16.mxu0 0
        %1423 = vmatmul.mubr.bf16.gmra.mxu0 %v1362
        %v1424 = vpop.f32.mrf.mxu0
        %v1425 = vadd.f32 %v1320, %v1424
        %v1426 = vpop.f32.mrf.mxu0
        %v1427 = vpop.f32.mrf.mxu0
        %v1428 = vadd.f32 %v1320, %v1427
        %v1429 = vpop.f32.mrf.mxu0
        %1430 = vmatprep.mubr.bf16.mxu0 0
        %1431 = vmatmul.mubr.bf16.gmra.mxu0 %v1364
        %v1432 = vpop.f32.mrf.mxu0
        %v1433 = vadd.f32 %v1320, %v1432
        %v1434 = vpop.f32.mrf.mxu0
        %v1435 = vpop.f32.mrf.mxu0
        %v1436 = vadd.f32 %v1320, %v1435
        %v1437 = vpop.f32.mrf.mxu0
        %1438 = vmatprep.mubr.bf16.mxu0 0
        %1439 = vmatmul.mubr.bf16.gmra.mxu0 %v1366
        %v1440 = vpop.f32.mrf.mxu0
        %v1441 = vadd.f32 %v1320, %v1440
        %v1442 = vpop.f32.mrf.mxu0
        %v1443 = vpop.f32.mrf.mxu0
        %v1444 = vadd.f32 %v1320, %v1443
        %v1445 = vpop.f32.mrf.mxu0
        %1446 = vmatprep.mubr.bf16.mxu0 0
        %1447 = vmatmul.mubr.bf16.gmra.mxu0 %v1368
        %v1448 = vpop.f32.mrf.mxu0
        %v1449 = vadd.f32 %v1320, %v1448
        %v1450 = vpop.f32.mrf.mxu0
        %v1451 = vpop.f32.mrf.mxu0
        %v1452 = vadd.f32 %v1320, %v1451
        %v1453 = vpop.f32.mrf.mxu0
        %1454 = vmatprep.mubr.bf16.mxu0 0
        %1455 = vmatmul.mubr.bf16.gmra.mxu0 %v1370
        %v1456 = vpop.f32.mrf.mxu0
        %v1457 = vadd.f32 %v1320, %v1456
        %v1458 = vpop.f32.mrf.mxu0
        %v1459 = vpop.f32.mrf.mxu0
        %v1460 = vadd.f32 %v1320, %v1459
        %v1461 = vpop.f32.mrf.mxu0
        %1462 = vmatprep.mubr.bf16.mxu0 0
        %1463 = vmatmul.mubr.bf16.gmra.mxu0 %v1372
        %v1464 = vpop.f32.mrf.mxu0
        %v1465 = vadd.f32 %v1320, %v1464
        %v1466 = vpop.f32.mrf.mxu0
        %v1467 = vpop.f32.mrf.mxu0
        %v1468 = vadd.f32 %v1320, %v1467
        %v1469 = vpop.f32.mrf.mxu0
        %1470 = vdwg.mxu0
        %v1471 = vmax.f32 %v1409, 0.0
        %v1472 = vmax.f32 %v1412, 0.0
        %v1473 = vmax.f32 %v1417, 0.0
        %v1474 = vmax.f32 %v1420, 0.0
        %v1475 = vmax.f32 %v1425, 0.0
        %v1476 = vmax.f32 %v1428, 0.0
        %v1477 = vmax.f32 %v1433, 0.0
        %v1478 = vmax.f32 %v1436, 0.0
        %v1479 = vmax.f32 %v1441, 0.0
        %v1480 = vmax.f32 %v1444, 0.0
        %v1481 = vmax.f32 %v1449, 0.0
        %v1482 = vmax.f32 %v1452, 0.0
        %v1483 = vmax.f32 %v1457, 0.0
        %v1484 = vmax.f32 %v1460, 0.0
        %v1485 = vmax.f32 %v1465, 0.0
        %v1486 = vmax.f32 %v1468, 0.0
        %v1487 = vsel %vm529, %v1471, 0.0
        %1488 = vadd.xlane.f32.xlu0 %v1487
        %v1489 = vpop.xlane.xlu0 %1488
        %v1490 = vsel %vm529, %v1472, 0.0
        %1491 = vadd.xlane.f32.xlu0 %v1490
        %v1492 = vpop.xlane.xlu0 %1491
        %v1493 = vsel %vm529, %v1473, 0.0
        %1494 = vadd.xlane.f32.xlu0 %v1493
        %v1495 = vpop.xlane.xlu0 %1494
        %v1496 = vsel %vm529, %v1474, 0.0
        %1497 = vadd.xlane.f32.xlu0 %v1496
        %v1498 = vpop.xlane.xlu0 %1497
        %v1499 = vsel %vm529, %v1475, 0.0
        %1500 = vadd.xlane.f32.xlu0 %v1499
        %v1501 = vpop.xlane.xlu0 %1500
        %v1502 = vsel %vm529, %v1476, 0.0
        %1503 = vadd.xlane.f32.xlu0 %v1502
        %v1504 = vpop.xlane.xlu0 %1503
        %v1505 = vsel %vm529, %v1477, 0.0
        %1506 = vadd.xlane.f32.xlu0 %v1505
        %v1507 = vpop.xlane.xlu0 %1506
        %v1508 = vsel %vm529, %v1478, 0.0
        %1509 = vadd.xlane.f32.xlu0 %v1508
        %v1510 = vpop.xlane.xlu0 %1509
        %v1511 = vsel %vm529, %v1479, 0.0
        %1512 = vadd.xlane.f32.xlu0 %v1511
        %v1513 = vpop.xlane.xlu0 %1512
        %v1514 = vsel %vm529, %v1480, 0.0
        %1515 = vadd.xlane.f32.xlu0 %v1514
        %v1516 = vpop.xlane.xlu0 %1515
        %v1517 = vsel %vm529, %v1481, 0.0
        %1518 = vadd.xlane.f32.xlu0 %v1517
        %v1519 = vpop.xlane.xlu0 %1518
        %v1520 = vsel %vm529, %v1482, 0.0
        %1521 = vadd.xlane.f32.xlu0 %v1520
        %v1522 = vpop.xlane.xlu0 %1521
        %v1523 = vsel %vm529, %v1483, 0.0
        %1524 = vadd.xlane.f32.xlu0 %v1523
        %v1525 = vpop.xlane.xlu0 %1524
        %v1526 = vsel %vm529, %v1484, 0.0
        %1527 = vadd.xlane.f32.xlu0 %v1526
        %v1528 = vpop.xlane.xlu0 %1527
        %v1529 = vsel %vm529, %v1485, 0.0
        %1530 = vadd.xlane.f32.xlu0 %v1529
        %v1531 = vpop.xlane.xlu0 %1530
        %v1532 = vsel %vm529, %v1486, 0.0
        %1533 = vadd.xlane.f32.xlu0 %v1532
        %v1534 = vpop.xlane.xlu0 %1533
        %v1535 = vmul.f32 %v1489, %v804
        %v1536 = vmul.f32 %v1492, %v804
        %v1537 = vmul.f32 %v1495, %v804
        %v1538 = vmul.f32 %v1498, %v804
        %v1539 = vmul.f32 %v1501, %v804
        %v1540 = vmul.f32 %v1504, %v804
        %v1541 = vmul.f32 %v1507, %v804
        %v1542 = vmul.f32 %v1510, %v804
        %v1543 = vmul.f32 %v1513, %v804
        %v1544 = vmul.f32 %v1516, %v804
        %v1545 = vmul.f32 %v1519, %v804
        %v1546 = vmul.f32 %v1522, %v804
        %v1547 = vmul.f32 %v1525, %v804
        %v1548 = vmul.f32 %v1528, %v804
        %v1549 = vmul.f32 %v1531, %v804
        %v1550 = vmul.f32 %v1534, %v804
        %v1551 = vmul.f32 %v1471, %v1471
        %v1552 = vmul.f32 %v1472, %v1472
        %v1553 = vmul.f32 %v1473, %v1473
        %v1554 = vmul.f32 %v1474, %v1474
        %v1555 = vmul.f32 %v1475, %v1475
        %v1556 = vmul.f32 %v1476, %v1476
        %v1557 = vmul.f32 %v1477, %v1477
        %v1558 = vmul.f32 %v1478, %v1478
        %v1559 = vmul.f32 %v1479, %v1479
        %v1560 = vmul.f32 %v1480, %v1480
        %v1561 = vmul.f32 %v1481, %v1481
        %v1562 = vmul.f32 %v1482, %v1482
        %v1563 = vmul.f32 %v1483, %v1483
        %v1564 = vmul.f32 %v1484, %v1484
        %v1565 = vmul.f32 %v1485, %v1485
        %v1566 = vmul.f32 %v1486, %v1486
        %v1567 = vsel %vm529, %v1551, 0.0
        %1568 = vadd.xlane.f32.xlu0 %v1567
        %v1569 = vpop.xlane.xlu0 %1568
        %v1570 = vsel %vm529, %v1552, 0.0
        %1571 = vadd.xlane.f32.xlu0 %v1570
        %v1572 = vpop.xlane.xlu0 %1571
        %v1573 = vsel %vm529, %v1553, 0.0
        %1574 = vadd.xlane.f32.xlu0 %v1573
        %v1575 = vpop.xlane.xlu0 %1574
        %v1576 = vsel %vm529, %v1554, 0.0
        %1577 = vadd.xlane.f32.xlu0 %v1576
        %v1578 = vpop.xlane.xlu0 %1577
        %v1579 = vsel %vm529, %v1555, 0.0
        %1580 = vadd.xlane.f32.xlu0 %v1579
        %v1581 = vpop.xlane.xlu0 %1580
        %v1582 = vsel %vm529, %v1556, 0.0
        %1583 = vadd.xlane.f32.xlu0 %v1582
        %v1584 = vpop.xlane.xlu0 %1583
        %v1585 = vsel %vm529, %v1557, 0.0
        %1586 = vadd.xlane.f32.xlu0 %v1585
        %v1587 = vpop.xlane.xlu0 %1586
        %v1588 = vsel %vm529, %v1558, 0.0
        %1589 = vadd.xlane.f32.xlu0 %v1588
        %v1590 = vpop.xlane.xlu0 %1589
        %v1591 = vsel %vm529, %v1559, 0.0
        %1592 = vadd.xlane.f32.xlu0 %v1591
        %v1593 = vpop.xlane.xlu0 %1592
        %v1594 = vsel %vm529, %v1560, 0.0
        %1595 = vadd.xlane.f32.xlu0 %v1594
        %v1596 = vpop.xlane.xlu0 %1595
        %v1597 = vsel %vm529, %v1561, 0.0
        %1598 = vadd.xlane.f32.xlu0 %v1597
        %v1599 = vpop.xlane.xlu0 %1598
        %v1600 = vsel %vm529, %v1562, 0.0
        %1601 = vadd.xlane.f32.xlu0 %v1600
        %v1602 = vpop.xlane.xlu0 %1601
        %v1603 = vsel %vm529, %v1563, 0.0
        %1604 = vadd.xlane.f32.xlu0 %v1603
        %v1605 = vpop.xlane.xlu0 %1604
        %v1606 = vsel %vm529, %v1564, 0.0
        %1607 = vadd.xlane.f32.xlu0 %v1606
        %v1608 = vpop.xlane.xlu0 %1607
        %v1609 = vsel %vm529, %v1565, 0.0
        %1610 = vadd.xlane.f32.xlu0 %v1609
        %v1611 = vpop.xlane.xlu0 %1610
        %v1612 = vsel %vm529, %v1566, 0.0
        %1613 = vadd.xlane.f32.xlu0 %v1612
        %v1614 = vpop.xlane.xlu0 %1613
        %v1615 = vmul.f32 %v1569, %v804
        %v1616 = vmul.f32 %v1572, %v804
        %v1617 = vmul.f32 %v1575, %v804
        %v1618 = vmul.f32 %v1578, %v804
        %v1619 = vmul.f32 %v1581, %v804
        %v1620 = vmul.f32 %v1584, %v804
        %v1621 = vmul.f32 %v1587, %v804
        %v1622 = vmul.f32 %v1590, %v804
        %v1623 = vmul.f32 %v1593, %v804
        %v1624 = vmul.f32 %v1596, %v804
        %v1625 = vmul.f32 %v1599, %v804
        %v1626 = vmul.f32 %v1602, %v804
        %v1627 = vmul.f32 %v1605, %v804
        %v1628 = vmul.f32 %v1608, %v804
        %v1629 = vmul.f32 %v1611, %v804
        %v1630 = vmul.f32 %v1614, %v804
        %v1631 = vmul.f32 %v1535, %v1535
        %v1632 = vmul.f32 %v1536, %v1536
        %v1633 = vmul.f32 %v1537, %v1537
        %v1634 = vmul.f32 %v1538, %v1538
        %v1635 = vmul.f32 %v1539, %v1539
        %v1636 = vmul.f32 %v1540, %v1540
        %v1637 = vmul.f32 %v1541, %v1541
        %v1638 = vmul.f32 %v1542, %v1542
        %v1639 = vmul.f32 %v1543, %v1543
        %v1640 = vmul.f32 %v1544, %v1544
        %v1641 = vmul.f32 %v1545, %v1545
        %v1642 = vmul.f32 %v1546, %v1546
        %v1643 = vmul.f32 %v1547, %v1547
        %v1644 = vmul.f32 %v1548, %v1548
        %v1645 = vmul.f32 %v1549, %v1549
        %v1646 = vmul.f32 %v1550, %v1550
        %v1647 = vsub.f32 %v1615, %v1631
        %v1648 = vsub.f32 %v1616, %v1632
        %v1649 = vsub.f32 %v1617, %v1633
        %v1650 = vsub.f32 %v1618, %v1634
        %v1651 = vsub.f32 %v1619, %v1635
        %v1652 = vsub.f32 %v1620, %v1636
        %v1653 = vsub.f32 %v1621, %v1637
        %v1654 = vsub.f32 %v1622, %v1638
        %v1655 = vsub.f32 %v1623, %v1639
        %v1656 = vsub.f32 %v1624, %v1640
        %v1657 = vsub.f32 %v1625, %v1641
        %v1658 = vsub.f32 %v1626, %v1642
        %v1659 = vsub.f32 %v1627, %v1643
        %v1660 = vsub.f32 %v1628, %v1644
        %v1661 = vsub.f32 %v1629, %v1645
        %v1662 = vsub.f32 %v1630, %v1646
        %v1663 = vadd.f32 %v1647, 1e-05
        %v1664 = vadd.f32 %v1648, 1e-05
        %v1665 = vadd.f32 %v1649, 1e-05
        %v1666 = vadd.f32 %v1650, 1e-05
        %v1667 = vadd.f32 %v1651, 1e-05
        %v1668 = vadd.f32 %v1652, 1e-05
        %v1669 = vadd.f32 %v1653, 1e-05
        %v1670 = vadd.f32 %v1654, 1e-05
        %v1671 = vadd.f32 %v1655, 1e-05
        %v1672 = vadd.f32 %v1656, 1e-05
        %v1673 = vadd.f32 %v1657, 1e-05
        %v1674 = vadd.f32 %v1658, 1e-05
        %v1675 = vadd.f32 %v1659, 1e-05
        %v1676 = vadd.f32 %v1660, 1e-05
        %v1677 = vadd.f32 %v1661, 1e-05
        %v1678 = vadd.f32 %v1662, 1e-05
        %v1679 = vrsqrt.pop %v1663
        %v1680 = vrsqrt.pop %v1664
        %v1681 = vrsqrt.pop %v1665
        %v1682 = vrsqrt.pop %v1666
        %v1683 = vrsqrt.pop %v1667
        %v1684 = vrsqrt.pop %v1668
        %v1685 = vrsqrt.pop %v1669
        %v1686 = vrsqrt.pop %v1670
        %v1687 = vrsqrt.pop %v1671
        %v1688 = vrsqrt.pop %v1672
        %v1689 = vrsqrt.pop %v1673
        %v1690 = vrsqrt.pop %v1674
        %v1691 = vrsqrt.pop %v1675
        %v1692 = vrsqrt.pop %v1676
        %v1693 = vrsqrt.pop %v1677
        %v1694 = vrsqrt.pop %v1678
        %s1695 = sld [smem:[#allocation2]]
        %s1696 = sld [smem:[#allocation2 + $0x1]]
        %v1697 = vld [vmem:[%s7] sm:$0x1]
        %v1699 = vlaneseq
        %v1700 = vshrl.u32 %v1699, 7
        %v1701 = vsub.s32 0, %v1700
        %v1702 = vrot.slane %v1697, %v1701
        %v1704 = vmul.f32 %v1471, %v1702
        %v1705 = vmul.f32 %v1472, %v1702
        %v1706 = vmul.f32 %v1473, %v1702
        %v1707 = vmul.f32 %v1474, %v1702
        %v1708 = vmul.f32 %v1475, %v1702
        %v1709 = vmul.f32 %v1476, %v1702
        %v1710 = vmul.f32 %v1477, %v1702
        %v1711 = vmul.f32 %v1478, %v1702
        %v1712 = vmul.f32 %v1479, %v1702
        %v1713 = vmul.f32 %v1480, %v1702
        %v1714 = vmul.f32 %v1481, %v1702
        %v1715 = vmul.f32 %v1482, %v1702
        %v1716 = vmul.f32 %v1483, %v1702
        %v1717 = vmul.f32 %v1484, %v1702
        %v1718 = vmul.f32 %v1485, %v1702
        %v1719 = vmul.f32 %v1486, %v1702
        %v1720 = vsel %vm529, %v1704, 0.0
        %1721 = vadd.xlane.f32.xlu0 %v1720
        %v1722 = vpop.xlane.xlu0 %1721
        %v1723 = vsel %vm529, %v1705, 0.0
        %1724 = vadd.xlane.f32.xlu0 %v1723
        %v1725 = vpop.xlane.xlu0 %1724
        %v1726 = vsel %vm529, %v1706, 0.0
        %1727 = vadd.xlane.f32.xlu0 %v1726
        %v1728 = vpop.xlane.xlu0 %1727
        %v1729 = vsel %vm529, %v1707, 0.0
        %1730 = vadd.xlane.f32.xlu0 %v1729
        %v1731 = vpop.xlane.xlu0 %1730
        %v1732 = vsel %vm529, %v1708, 0.0
        %1733 = vadd.xlane.f32.xlu0 %v1732
        %v1734 = vpop.xlane.xlu0 %1733
        %v1735 = vsel %vm529, %v1709, 0.0
        %1736 = vadd.xlane.f32.xlu0 %v1735
        %v1737 = vpop.xlane.xlu0 %1736
        %v1738 = vsel %vm529, %v1710, 0.0
        %1739 = vadd.xlane.f32.xlu0 %v1738
        %v1740 = vpop.xlane.xlu0 %1739
        %v1741 = vsel %vm529, %v1711, 0.0
        %1742 = vadd.xlane.f32.xlu0 %v1741
        %v1743 = vpop.xlane.xlu0 %1742
        %v1744 = vsel %vm529, %v1712, 0.0
        %1745 = vadd.xlane.f32.xlu0 %v1744
        %v1746 = vpop.xlane.xlu0 %1745
        %v1747 = vsel %vm529, %v1713, 0.0
        %1748 = vadd.xlane.f32.xlu0 %v1747
        %v1749 = vpop.xlane.xlu0 %1748
        %v1750 = vsel %vm529, %v1714, 0.0
        %1751 = vadd.xlane.f32.xlu0 %v1750
        %v1752 = vpop.xlane.xlu0 %1751
        %v1753 = vsel %vm529, %v1715, 0.0
        %1754 = vadd.xlane.f32.xlu0 %v1753
        %v1755 = vpop.xlane.xlu0 %1754
        %v1756 = vsel %vm529, %v1716, 0.0
        %1757 = vadd.xlane.f32.xlu0 %v1756
        %v1758 = vpop.xlane.xlu0 %1757
        %v1759 = vsel %vm529, %v1717, 0.0
        %1760 = vadd.xlane.f32.xlu0 %v1759
        %v1761 = vpop.xlane.xlu0 %1760
        %v1762 = vsel %vm529, %v1718, 0.0
        %1763 = vadd.xlane.f32.xlu0 %v1762
        %v1764 = vpop.xlane.xlu0 %1763
        %v1765 = vsel %vm529, %v1719, 0.0
        %1766 = vadd.xlane.f32.xlu0 %v1765
        %v1767 = vpop.xlane.xlu0 %1766
        %v1768 = vstv %s1695
        %v1769 = vmul.f32 %v1535, %v1768
        %v1770 = vmul.f32 %v1536, %v1768
        %v1771 = vmul.f32 %v1537, %v1768
        %v1772 = vmul.f32 %v1538, %v1768
        %v1773 = vmul.f32 %v1539, %v1768
        %v1774 = vmul.f32 %v1540, %v1768
        %v1775 = vmul.f32 %v1541, %v1768
        %v1776 = vmul.f32 %v1542, %v1768
        %v1777 = vmul.f32 %v1543, %v1768
        %v1778 = vmul.f32 %v1544, %v1768
        %v1779 = vmul.f32 %v1545, %v1768
        %v1780 = vmul.f32 %v1546, %v1768
        %v1781 = vmul.f32 %v1547, %v1768
        %v1782 = vmul.f32 %v1548, %v1768
        %v1783 = vmul.f32 %v1549, %v1768
        %v1784 = vmul.f32 %v1550, %v1768
        %v1785 = vsub.f32 %v1722, %v1769
        %v1786 = vsub.f32 %v1725, %v1770
        %v1787 = vsub.f32 %v1728, %v1771
        %v1788 = vsub.f32 %v1731, %v1772
        %v1789 = vsub.f32 %v1734, %v1773
        %v1790 = vsub.f32 %v1737, %v1774
        %v1791 = vsub.f32 %v1740, %v1775
        %v1792 = vsub.f32 %v1743, %v1776
        %v1793 = vsub.f32 %v1746, %v1777
        %v1794 = vsub.f32 %v1749, %v1778
        %v1795 = vsub.f32 %v1752, %v1779
        %v1796 = vsub.f32 %v1755, %v1780
        %v1797 = vsub.f32 %v1758, %v1781
        %v1798 = vsub.f32 %v1761, %v1782
        %v1799 = vsub.f32 %v1764, %v1783
        %v1800 = vsub.f32 %v1767, %v1784
        %v1801 = vmul.f32 %v1679, %v1785
        %v1802 = vmul.f32 %v1680, %v1786
        %v1803 = vmul.f32 %v1681, %v1787
        %v1804 = vmul.f32 %v1682, %v1788
        %v1805 = vmul.f32 %v1683, %v1789
        %v1806 = vmul.f32 %v1684, %v1790
        %v1807 = vmul.f32 %v1685, %v1791
        %v1808 = vmul.f32 %v1686, %v1792
        %v1809 = vmul.f32 %v1687, %v1793
        %v1810 = vmul.f32 %v1688, %v1794
        %v1811 = vmul.f32 %v1689, %v1795
        %v1812 = vmul.f32 %v1690, %v1796
        %v1813 = vmul.f32 %v1691, %v1797
        %v1814 = vmul.f32 %v1692, %v1798
        %v1815 = vmul.f32 %v1693, %v1799
        %v1816 = vmul.f32 %v1694, %v1800
        %v1817 = vstv %s1696
        %v1818 = vadd.f32 %v1801, %v1817
        %v1819 = vadd.f32 %v1802, %v1817
        %v1820 = vadd.f32 %v1803, %v1817
        %v1821 = vadd.f32 %v1804, %v1817
        %v1822 = vadd.f32 %v1805, %v1817
        %v1823 = vadd.f32 %v1806, %v1817
        %v1824 = vadd.f32 %v1807, %v1817
        %v1825 = vadd.f32 %v1808, %v1817
        %v1826 = vadd.f32 %v1809, %v1817
        %v1827 = vadd.f32 %v1810, %v1817
        %v1828 = vadd.f32 %v1811, %v1817
        %v1829 = vadd.f32 %v1812, %v1817
        %v1830 = vadd.f32 %v1813, %v1817
        %v1831 = vadd.f32 %v1814, %v1817
        %v1832 = vadd.f32 %v1815, %v1817
        %v1833 = vadd.f32 %v1816, %v1817
        %v1850 = vlaneseq
        %v1851 = vand.u32 %v1850, 127
        %v1852 = vlaneseq
        %v1853 = vshrl.u32 %v1852, 7
        %v1854 = vsub.s32 %v1851, %v1853
        %v1855 = vrot.slane %v1818, %v1854
        %v1856 = vadd.s32 %v1851, 4294967288
        %v1857 = vlaneseq
        %v1858 = vshrl.u32 %v1857, 7
        %v1859 = vsub.s32 %v1856, %v1858
        %v1860 = vrot.slane %v1819, %v1859
        %vm1861 = vcmask 130112
        %v1862 = vsel %vm1861, %v1860, %v1855
        %v1863 = vadd.s32 %v1851, 4294967280
        %v1864 = vlaneseq
        %v1865 = vshrl.u32 %v1864, 7
        %v1866 = vsub.s32 %v1863, %v1865
        %v1867 = vrot.slane %v1820, %v1866
        %vm1868 = vcmask 195712
        %v1869 = vsel %vm1868, %v1867, %v1862
        %v1870 = vadd.s32 %v1851, 4294967272
        %v1871 = vlaneseq
        %v1872 = vshrl.u32 %v1871, 7
        %v1873 = vsub.s32 %v1870, %v1872
        %v1874 = vrot.slane %v1821, %v1873
        %vm1875 = vcmask 261312
        %v1876 = vsel %vm1875, %v1874, %v1869
        %v1877 = vadd.s32 %v1851, 4294967264
        %v1878 = vlaneseq
        %v1879 = vshrl.u32 %v1878, 7
        %v1880 = vsub.s32 %v1877, %v1879
        %v1881 = vrot.slane %v1822, %v1880
        %vm1882 = vcmask 326912
        %v1883 = vsel %vm1882, %v1881, %v1876
        %v1884 = vadd.s32 %v1851, 4294967256
        %v1885 = vlaneseq
        %v1886 = vshrl.u32 %v1885, 7
        %v1887 = vsub.s32 %v1884, %v1886
        %v1888 = vrot.slane %v1823, %v1887
        %vm1889 = vcmask 392512
        %v1890 = vsel %vm1889, %v1888, %v1883
        %v1891 = vadd.s32 %v1851, 4294967248
        %v1892 = vlaneseq
        %v1893 = vshrl.u32 %v1892, 7
        %v1894 = vsub.s32 %v1891, %v1893
        %v1895 = vrot.slane %v1824, %v1894
        %vm1896 = vcmask 458112
        %v1897 = vsel %vm1896, %v1895, %v1890
        %v1898 = vadd.s32 %v1851, 4294967240
        %v1899 = vlaneseq
        %v1900 = vshrl.u32 %v1899, 7
        %v1901 = vsub.s32 %v1898, %v1900
        %v1902 = vrot.slane %v1825, %v1901
        %vm1903 = vcmask 523712
        %v1904 = vsel %vm1903, %v1902, %v1897
        %v1905 = vadd.s32 %v1851, 4294967232
        %v1906 = vlaneseq
        %v1907 = vshrl.u32 %v1906, 7
        %v1908 = vsub.s32 %v1905, %v1907
        %v1909 = vrot.slane %v1826, %v1908
        %vm1910 = vcmask 589312
        %v1911 = vsel %vm1910, %v1909, %v1904
        %v1912 = vadd.s32 %v1851, 4294967224
        %v1913 = vlaneseq
        %v1914 = vshrl.u32 %v1913, 7
        %v1915 = vsub.s32 %v1912, %v1914
        %v1916 = vrot.slane %v1827, %v1915
        %vm1917 = vcmask 654912
        %v1918 = vsel %vm1917, %v1916, %v1911
        %v1919 = vadd.s32 %v1851, 4294967216
        %v1920 = vlaneseq
        %v1921 = vshrl.u32 %v1920, 7
        %v1922 = vsub.s32 %v1919, %v1921
        %v1923 = vrot.slane %v1828, %v1922
        %vm1924 = vcmask 720512
        %v1925 = vsel %vm1924, %v1923, %v1918
        %v1926 = vadd.s32 %v1851, 4294967208
        %v1927 = vlaneseq
        %v1928 = vshrl.u32 %v1927, 7
        %v1929 = vsub.s32 %v1926, %v1928
        %v1930 = vrot.slane %v1829, %v1929
        %vm1931 = vcmask 786112
        %v1932 = vsel %vm1931, %v1930, %v1925
        %v1933 = vadd.s32 %v1851, 4294967200
        %v1934 = vlaneseq
        %v1935 = vshrl.u32 %v1934, 7
        %v1936 = vsub.s32 %v1933, %v1935
        %v1937 = vrot.slane %v1830, %v1936
        %vm1938 = vcmask 851712
        %v1939 = vsel %vm1938, %v1937, %v1932
        %v1940 = vadd.s32 %v1851, 4294967192
        %v1941 = vlaneseq
        %v1942 = vshrl.u32 %v1941, 7
        %v1943 = vsub.s32 %v1940, %v1942
        %v1944 = vrot.slane %v1831, %v1943
        %vm1945 = vcmask 917312
        %v1946 = vsel %vm1945, %v1944, %v1939
        %v1947 = vadd.s32 %v1851, 4294967184
        %v1948 = vlaneseq
        %v1949 = vshrl.u32 %v1948, 7
        %v1950 = vsub.s32 %v1947, %v1949
        %v1951 = vrot.slane %v1832, %v1950
        %vm1952 = vcmask 982912
        %v1953 = vsel %vm1952, %v1951, %v1946
        %v1954 = vadd.s32 %v1851, 4294967176
        %v1955 = vlaneseq
        %v1956 = vshrl.u32 %v1955, 7
        %v1957 = vsub.s32 %v1954, %v1956
        %v1958 = vrot.slane %v1833, %v1957
        %vm1959 = vcmask 1048512
        %v1960 = vsel %vm1959, %v1958, %v1953
        %1962 = vst [vmem:[%s342] sm:$0x1] %v1960
        %p1963 = scmp.lt.s32.totalorder %s21, 1
        %s1964 = scalar_select %p1963, %s21, 1
        %s1965 = scalar_lea.vmem %s9, %s1964
        // Predicated region
        $region61: #{variance_predictor.1} parent=55 // pred_check
          %p1966 = pneg %p233
        $region62: #{variance_predictor.1} parent=55 // pred_check_branch
          %1968 = sbr.rel (%p1966) target = $region64
        $region63: #{variance_predictor.1} parent=55 // pred_region
          _
        $region64: #{variance_predictor.1} parent=55 // pred_fallthru
          _
      $region56: #{variance_predictor.1} parent=5 // pred_fallthru
        _
      %p1969 = scmp.le.s32.totalorder 2, %s16
      // Predicated region
      $region65: #{variance_predictor.1} parent=5 // pred_check
        %p1970 = pneg %p1969
      $region66: #{variance_predictor.1} parent=5 // pred_check_branch
        %1972 = sbr.rel (%p1970) target = $region68
      $region67: #{variance_predictor.1} parent=5 // pred_region
        %s1973 = ssub.s32 %s16, 2
        // Predicated region
        $region69: #{variance_predictor.1} parent=67 // pred_check
          %p1974 = pneg %p239
        $region70: #{variance_predictor.1} parent=67 // pred_check_branch
          %1976 = sbr.rel (%p1974) target = $region72
        $region71: #{variance_predictor.1} parent=67 // pred_region
          %p1977 = scmp.lt.s32.totalorder %s22, 1
          %s1978 = scalar_select %p1977, %s22, 1
          %s1979 = scalar_lea.vmem %s9, %s1978
        $region72: #{variance_predictor.1} parent=67 // pred_fallthru
          _
      $region68: #{variance_predictor.1} parent=5 // pred_fallthru
        _
    $region6: #{variance_predictor.1} parent=1 // loop_footer
      %s20 = sadd.s32 1, %s16
    $region7: #{variance_predictor.1} parent=1 // loop_footer_branch
      %15 = sbr.rel target = $region3
    $region8: #{variance_predictor.1} parent=1 // loop_exit
      _
    %1980 = vsyncpa [#allocation3], 1
    %s1981 = scalar_lea.sflag [#allocation3], 1
    %1982 = vsyncpa %s1981, 1

</llo_original>
